<compile_context>
chip_gen: v5e
topology: v5e:2x2
jax: 0.10.0
libtpu: 0.0.40
codegen_flags: <defaults>
</compile_context>

<pallas_src>
import functools

import jax
import jax.numpy as jnp
from jax import lax
from jax.experimental import pallas as pl
from jax.experimental.pallas import tpu as pltpu


def speaker_encoder_kernel(mels_ref,
                           w0_ref, b0_ref,
                           w1_ref, b1_ref,
                           w2_ref, b2_ref,
                           wlin_ref, blin_ref,
                           out_ref,
                           h0_ref, c0_ref, h1_ref, c1_ref, h2_ref, c2_ref,
                           *, hidden_size, unroll):
    H = hidden_size
    Tc, Bp, _ = mels_ref.shape
    state_refs = (h0_ref, c0_ref, h1_ref, c1_ref, h2_ref, c2_ref)

    # Zero the carried LSTM state on the first time-chunk only.
    @pl.when(pl.program_id(0) == 0)
    def _():
        for ref in state_refs:
            ref[...] = jnp.zeros_like(ref)

    # Hoist the [1, 4H] -> [Bp, 4H] bias broadcast out of the recurrence.
    b0 = jnp.broadcast_to(b0_ref[...], (Bp, 4 * H))
    b1 = jnp.broadcast_to(b1_ref[...], (Bp, 4 * H))
    b2 = jnp.broadcast_to(b2_ref[...], (Bp, 4 * H))

    def lstm_cell(x, h, c, w_ref, b):
        # Single fused MXU matmul per cell: [x | h] @ [Wih; Whh] -> [Bp, 4H].
        xh = jnp.concatenate([x, h], axis=1)
        z = jnp.dot(xh, w_ref[...], preferred_element_type=jnp.float32) + b
        # Two full-width transcendentals; slice gates (PyTorch order i, f, g, o).
        sig = jax.nn.sigmoid(z)
        tah = jnp.tanh(z)
        i_g = sig[:, 0 * H:1 * H]
        f_g = sig[:, 1 * H:2 * H]
        o_g = sig[:, 3 * H:4 * H]
        g_g = tah[:, 2 * H:3 * H]
        c_new = f_g * c + i_g * g_g
        h_new = o_g * jnp.tanh(c_new)
        return h_new, c_new

    init = tuple(ref[...] for ref in state_refs)

    def step(t, carry):
        h0, c0, h1, c1, h2, c2 = carry
        x_t = mels_ref[t]  # [Bp, n_mels]
        h0, c0 = lstm_cell(x_t, h0, c0, w0_ref, b0)
        h1, c1 = lstm_cell(h0, h1, c1, w1_ref, b1)
        h2, c2 = lstm_cell(h1, h2, c2, w2_ref, b2)
        return (h0, c0, h1, c1, h2, c2)

    # Unrolled so layer-0(t+1) can overlap layer-1/2(t) in the VLIW schedule.
    carry = lax.fori_loop(0, Tc, step, init, unroll=unroll)

    # Write the state back for the next time-chunk.
    for ref, val in zip(state_refs, carry):
        ref[...] = val

    # Head: Linear -> ReLU -> L2-normalize, only on the final time-chunk.
    @pl.when(pl.program_id(0) == pl.num_programs(0) - 1)
    def _():
        h_last = carry[4]  # top-layer hidden at final time step: [Bp, H]
        emb = jnp.dot(h_last, wlin_ref[...],
                      preferred_element_type=jnp.float32) + blin_ref[...]
        emb = jnp.maximum(emb, 0.0)
        sumsq = jnp.sum(emb * emb, axis=1, keepdims=True)
        # F.normalize(p=2, dim=1, eps=1e-12): clamping sum-of-squares at eps^2 differs
        # from clamping the norm only when the norm is below 1e-12 (irrelevant here).
        inv_norm = lax.rsqrt(jnp.maximum(sumsq, 1e-24))
        out_ref[...] = (emb * inv_norm).astype(out_ref.dtype)


def speaker_encoder_forward(mels, params, *, time_chunk=64):
    """mels: [B, T, n_mels] (batch_first, like the PyTorch module)."""
    B, T, D = mels.shape
    H = params["whh0_t"].shape[0]
    E = params["wlin_t"].shape[1]

    # Pad batch up to the f32 sublane minimum (8); padded rows are independent
    # and get sliced off below.
    Bp = max(8, ((B + 7) // 8) * 8)
    mels_tm = jnp.transpose(mels, (1, 0, 2)).astype(jnp.float32)  # [T, B, D]
    if Bp != B:
        mels_tm = jnp.pad(mels_tm, ((0, 0), (0, Bp - B), (0, 0)))

    # Time-chunk that divides T (h/c carried across chunks in VMEM scratch).
    tc = min(time_chunk, T)
    while T % tc != 0:
        tc -= 1
    n_chunks = T // tc
    unroll = True if tc <= 8 else 4

    # Fused per-layer weights: z = [x | h] @ [Wih; Whh] + (b_ih + b_hh).
    w0 = jnp.concatenate([params["wih0_t"], params["whh0_t"]], axis=0)  # [D+H, 4H]
    w1 = jnp.concatenate([params["wih1_t"], params["whh1_t"]], axis=0)  # [2H, 4H]
    w2 = jnp.concatenate([params["wih2_t"], params["whh2_t"]], axis=0)  # [2H, 4H]

    def full2d(arr):
        return pl.BlockSpec(arr.shape, lambda t: (0, 0))

    kernel = functools.partial(speaker_encoder_kernel, hidden_size=H, unroll=unroll)

    out = pl.pallas_call(
        kernel,
        out_shape=jax.ShapeDtypeStruct((Bp, E), jnp.float32),
        grid=(n_chunks,),
        in_specs=[
            pl.BlockSpec((tc, Bp, D), lambda t: (t, 0, 0)),   # mel time-chunks (pipelined)
            full2d(w0), full2d(params["b0"]),
            full2d(w1), full2d(params["b1"]),
            full2d(w2), full2d(params["b2"]),
            full2d(params["wlin_t"]), full2d(params["blin"]),
        ],
        out_specs=pl.BlockSpec((Bp, E), lambda t: (0, 0)),
        scratch_shapes=[pltpu.VMEM((Bp, H), jnp.float32)] * 6,  # h0,c0,h1,c1,h2,c2
        compiler_params=pltpu.CompilerParams(
            dimension_semantics=("arbitrary",)),
    )(mels_tm, w0, params["b0"], w1, params["b1"], w2, params["b2"],
      params["wlin_t"], params["blin"])

    return out[:B]


def init_params(key, n_mels, hidden, embed, num_layers=3):
    """Deterministic synthetic init, PyTorch-style uniform(-1/sqrt(H), 1/sqrt(H))."""
    k = 1.0 / jnp.sqrt(jnp.float32(hidden))
    params = {}
    keys = jax.random.split(key, 4 * num_layers + 2)
    ki = 0
    for layer in range(num_layers):
        d_in = n_mels if layer == 0 else hidden
        w_ih = jax.random.uniform(keys[ki], (4 * hidden, d_in), jnp.float32, -k, k); ki += 1
        w_hh = jax.random.uniform(keys[ki], (4 * hidden, hidden), jnp.float32, -k, k); ki += 1
        b_ih = jax.random.uniform(keys[ki], (4 * hidden,), jnp.float32, -k, k); ki += 1
        b_hh = jax.random.uniform(keys[ki], (4 * hidden,), jnp.float32, -k, k); ki += 1
        params[f"wih{layer}_t"] = w_ih.T                       # [d_in, 4H]
        params[f"whh{layer}_t"] = w_hh.T                       # [H, 4H]
        params[f"b{layer}"] = (b_ih + b_hh).reshape(1, -1)     # [1, 4H]
    w_lin = jax.random.uniform(keys[ki], (embed, hidden), jnp.float32, -k, k); ki += 1
    b_lin = jax.random.uniform(keys[ki], (embed,), jnp.float32, -k, k); ki += 1
    params["wlin_t"] = w_lin.T                                 # [H, E]
    params["blin"] = b_lin.reshape(1, -1)                      # [1, E]
    return params


def reference_forward(mels, params, hidden):
    """Pure-JAX reference matching nn.LSTM(batch_first) -> Linear -> ReLU -> normalize."""
    B, T, _ = mels.shape
    H = hidden
    x = mels.astype(jnp.float32)
    for layer in range(3):
        w_ih_t, w_hh_t, b = params[f"wih{layer}_t"], params[f"whh{layer}_t"], params[f"b{layer}"]
        h = jnp.zeros((B, H), jnp.float32)
        c = jnp.zeros((B, H), jnp.float32)
        outs = []
        for t in range(T):
            z = x[:, t, :] @ w_ih_t + h @ w_hh_t + b
            i_g = jax.nn.sigmoid(z[:, 0 * H:1 * H])
            f_g = jax.nn.sigmoid(z[:, 1 * H:2 * H])
            g_g = jnp.tanh(z[:, 2 * H:3 * H])
            o_g = jax.nn.sigmoid(z[:, 3 * H:4 * H])
            c = f_g * c + i_g * g_g
            h = o_g * jnp.tanh(c)
            outs.append(h)
        x = jnp.stack(outs, axis=1)
    last = x[:, -1]
    emb = jnp.maximum(last @ params["wlin_t"] + params["blin"], 0.0)
    norm = jnp.sqrt(jnp.sum(emb * emb, axis=1, keepdims=True))
    return emb / jnp.maximum(norm, 1e-12)


if __name__ == "__main__":
    # Small shapes consistent with the module: batch=2, seq=8, n_mels=32,
    # hidden=32, embedding=32, 3 LSTM layers.
    B, T, N_MELS, HIDDEN, EMBED = 2, 8, 32, 32, 32

    key = jax.random.PRNGKey(0)
    k_mels, k_params = jax.random.split(key)
    mels = jax.random.normal(k_mels, (B, T, N_MELS), jnp.float32)
    params = init_params(k_params, N_MELS, HIDDEN, EMBED, num_layers=3)

    # time_chunk=4 -> grid=(2,) so the chunked h/c carry is actually exercised.
    out = speaker_encoder_forward(mels, params, time_chunk=4)
    out = jax.block_until_ready(out)

    ref = reference_forward(mels, params, HIDDEN)
    assert out.shape == (B, EMBED)
    assert jnp.allclose(out, ref, atol=1e-5, rtol=1e-5), "mismatch vs JAX reference"

    print("KERNEL_OK")
</pallas_src>

<mosaic_0001>
module attributes {stable_mosaic.version = 11 : i64} {
  func.func @speaker_encoder_kernel(%arg0: i32, %arg1: memref<4x8x32xf32, #tpu.memory_space<vmem>>, %arg2: memref<64x128xf32, #tpu.memory_space<vmem>>, %arg3: memref<1x128xf32, #tpu.memory_space<vmem>>, %arg4: memref<64x128xf32, #tpu.memory_space<vmem>>, %arg5: memref<1x128xf32, #tpu.memory_space<vmem>>, %arg6: memref<64x128xf32, #tpu.memory_space<vmem>>, %arg7: memref<1x128xf32, #tpu.memory_space<vmem>>, %arg8: memref<32x32xf32, #tpu.memory_space<vmem>>, %arg9: memref<1x32xf32, #tpu.memory_space<vmem>>, %arg10: memref<8x32xf32, #tpu.memory_space<vmem>>, %arg11: memref<8x32xf32, #tpu.memory_space<vmem>>, %arg12: memref<8x32xf32, #tpu.memory_space<vmem>>, %arg13: memref<8x32xf32, #tpu.memory_space<vmem>>, %arg14: memref<8x32xf32, #tpu.memory_space<vmem>>, %arg15: memref<8x32xf32, #tpu.memory_space<vmem>>, %arg16: memref<8x32xf32, #tpu.memory_space<vmem>>) attributes {dimension_semantics = [#tpu.dimension_semantics<arbitrary>], iteration_bounds = array<i64: 2>, scalar_prefetch = 0 : i64, scratch_operands = 6 : i64, tpu.core_type = #tpu.core_type<tc>, window_params = [{transform_indices = @transform_0, window_bounds = array<i64: 4, 8, 32>}, {pipeline_mode = #tpu.pipeline_mode<synchronous>, transform_indices = @transform_1, window_bounds = array<i64: 64, 128>}, {pipeline_mode = #tpu.pipeline_mode<synchronous>, transform_indices = @transform_2, window_bounds = array<i64: 1, 128>}, {pipeline_mode = #tpu.pipeline_mode<synchronous>, transform_indices = @transform_3, window_bounds = array<i64: 64, 128>}, {pipeline_mode = #tpu.pipeline_mode<synchronous>, transform_indices = @transform_4, window_bounds = array<i64: 1, 128>}, {pipeline_mode = #tpu.pipeline_mode<synchronous>, transform_indices = @transform_5, window_bounds = array<i64: 64, 128>}, {pipeline_mode = #tpu.pipeline_mode<synchronous>, transform_indices = @transform_6, window_bounds = array<i64: 1, 128>}, {pipeline_mode = #tpu.pipeline_mode<synchronous>, transform_indices = @transform_7, window_bounds = array<i64: 32, 32>}, {pipeline_mode = #tpu.pipeline_mode<synchronous>, transform_indices = @transform_8, window_bounds = array<i64: 1, 32>}, {pipeline_mode = #tpu.pipeline_mode<synchronous>, transform_indices = @transform_9, window_bounds = array<i64: 8, 32>}]} {
    %c0_i32 = arith.constant 0 : i32
    %0 = arith.cmpi eq, %arg0, %c0_i32 : i32
    %1 = arith.extui %0 : i1 to i32
    %c0_i32_0 = arith.constant 0 : i32
    %2 = arith.cmpi ne, %1, %c0_i32_0 : i32
    scf.if %2 {
      %cst_88 = arith.constant 0.000000e+00 : f32
      %267 = vector.broadcast %cst_88 : f32 to vector<8x32xf32>
      %c0_89 = arith.constant 0 : index
      %c0_90 = arith.constant 0 : index
      %268 = vector.load %arg11[%c0_89, %c0_90] : memref<8x32xf32, #tpu.memory_space<vmem>>, vector<8x32xf32>
      tpu.vector_store %arg11[%c0_89, %c0_90], %267 {strides = array<i32>} : memref<8x32xf32, #tpu.memory_space<vmem>>, vector<8x32xf32>,
      %cst_91 = arith.constant 0.000000e+00 : f32
      %269 = vector.broadcast %cst_91 : f32 to vector<8x32xf32>
      %c0_92 = arith.constant 0 : index
      %c0_93 = arith.constant 0 : index
      %270 = vector.load %arg12[%c0_92, %c0_93] : memref<8x32xf32, #tpu.memory_space<vmem>>, vector<8x32xf32>
      tpu.vector_store %arg12[%c0_92, %c0_93], %269 {strides = array<i32>} : memref<8x32xf32, #tpu.memory_space<vmem>>, vector<8x32xf32>,
      %cst_94 = arith.constant 0.000000e+00 : f32
      %271 = vector.broadcast %cst_94 : f32 to vector<8x32xf32>
      %c0_95 = arith.constant 0 : index
      %c0_96 = arith.constant 0 : index
      %272 = vector.load %arg13[%c0_95, %c0_96] : memref<8x32xf32, #tpu.memory_space<vmem>>, vector<8x32xf32>
      tpu.vector_store %arg13[%c0_95, %c0_96], %271 {strides = array<i32>} : memref<8x32xf32, #tpu.memory_space<vmem>>, vector<8x32xf32>,
      %cst_97 = arith.constant 0.000000e+00 : f32
      %273 = vector.broadcast %cst_97 : f32 to vector<8x32xf32>
      %c0_98 = arith.constant 0 : index
      %c0_99 = arith.constant 0 : index
      %274 = vector.load %arg14[%c0_98, %c0_99] : memref<8x32xf32, #tpu.memory_space<vmem>>, vector<8x32xf32>
      tpu.vector_store %arg14[%c0_98, %c0_99], %273 {strides = array<i32>} : memref<8x32xf32, #tpu.memory_space<vmem>>, vector<8x32xf32>,
      %cst_100 = arith.constant 0.000000e+00 : f32
      %275 = vector.broadcast %cst_100 : f32 to vector<8x32xf32>
      %c0_101 = arith.constant 0 : index
      %c0_102 = arith.constant 0 : index
      %276 = vector.load %arg15[%c0_101, %c0_102] : memref<8x32xf32, #tpu.memory_space<vmem>>, vector<8x32xf32>
      tpu.vector_store %arg15[%c0_101, %c0_102], %275 {strides = array<i32>} : memref<8x32xf32, #tpu.memory_space<vmem>>, vector<8x32xf32>,
      %cst_103 = arith.constant 0.000000e+00 : f32
      %277 = vector.broadcast %cst_103 : f32 to vector<8x32xf32>
      %c0_104 = arith.constant 0 : index
      %c0_105 = arith.constant 0 : index
      %278 = vector.load %arg16[%c0_104, %c0_105] : memref<8x32xf32, #tpu.memory_space<vmem>>, vector<8x32xf32>
      tpu.vector_store %arg16[%c0_104, %c0_105], %277 {strides = array<i32>} : memref<8x32xf32, #tpu.memory_space<vmem>>, vector<8x32xf32>,
    } else {
    }
    %c0 = arith.constant 0 : index
    %c0_1 = arith.constant 0 : index
    %3 = vector.load %arg3[%c0, %c0_1] : memref<1x128xf32, #tpu.memory_space<vmem>>, vector<1x128xf32>
    %4 = vector.shape_cast %3 : vector<1x128xf32> to vector<1x128xf32>
    %5 = vector.broadcast %4 : vector<1x128xf32> to vector<8x128xf32>
    %c0_2 = arith.constant 0 : index
    %c0_3 = arith.constant 0 : index
    %6 = vector.load %arg5[%c0_2, %c0_3] : memref<1x128xf32, #tpu.memory_space<vmem>>, vector<1x128xf32>
    %7 = vector.shape_cast %6 : vector<1x128xf32> to vector<1x128xf32>
    %8 = vector.broadcast %7 : vector<1x128xf32> to vector<8x128xf32>
    %c0_4 = arith.constant 0 : index
    %c0_5 = arith.constant 0 : index
    %9 = vector.load %arg7[%c0_4, %c0_5] : memref<1x128xf32, #tpu.memory_space<vmem>>, vector<1x128xf32>
    %10 = vector.shape_cast %9 : vector<1x128xf32> to vector<1x128xf32>
    %11 = vector.broadcast %10 : vector<1x128xf32> to vector<8x128xf32>
    %c0_6 = arith.constant 0 : index
    %c0_7 = arith.constant 0 : index
    %12 = vector.load %arg11[%c0_6, %c0_7] : memref<8x32xf32, #tpu.memory_space<vmem>>, vector<8x32xf32>
    %c0_8 = arith.constant 0 : index
    %c0_9 = arith.constant 0 : index
    %13 = vector.load %arg12[%c0_8, %c0_9] : memref<8x32xf32, #tpu.memory_space<vmem>>, vector<8x32xf32>
    %c0_10 = arith.constant 0 : index
    %c0_11 = arith.constant 0 : index
    %14 = vector.load %arg13[%c0_10, %c0_11] : memref<8x32xf32, #tpu.memory_space<vmem>>, vector<8x32xf32>
    %c0_12 = arith.constant 0 : index
    %c0_13 = arith.constant 0 : index
    %15 = vector.load %arg14[%c0_12, %c0_13] : memref<8x32xf32, #tpu.memory_space<vmem>>, vector<8x32xf32>
    %c0_14 = arith.constant 0 : index
    %c0_15 = arith.constant 0 : index
    %16 = vector.load %arg15[%c0_14, %c0_15] : memref<8x32xf32, #tpu.memory_space<vmem>>, vector<8x32xf32>
    %c0_16 = arith.constant 0 : index
    %c0_17 = arith.constant 0 : index
    %17 = vector.load %arg16[%c0_16, %c0_17] : memref<8x32xf32, #tpu.memory_space<vmem>>, vector<8x32xf32>
    %c0_i32_18 = arith.constant 0 : i32
    %18 = arith.index_cast %c0_i32_18 : i32 to index
    %c0_19 = arith.constant 0 : index
    %c0_20 = arith.constant 0 : index
    %19 = vector.load %arg1[%18, %c0_19, %c0_20] : memref<4x8x32xf32, #tpu.memory_space<vmem>>, vector<1x8x32xf32>
    %20 = vector.shape_cast %19 : vector<1x8x32xf32> to vector<8x32xf32>
    %21 = tpu.concatenate %20, %12 in 1 : vector<8x32xf32>, vector<8x32xf32> -> vector<8x64xf32>
    %c0_21 = arith.constant 0 : index
    %c0_22 = arith.constant 0 : index
    %22 = vector.load %arg2[%c0_21, %c0_22] : memref<64x128xf32, #tpu.memory_space<vmem>>, vector<64x128xf32>
    %cst = arith.constant dense<0.000000e+00> : vector<8x128xf32>
    %23 = tpu.matmul %21, %22, %cst {dimension_numbers = #tpu.dot_dimension_numbers<[1], [0], [0], [1], [0, 0, 1, 1], [], []>} : vector<8x64xf32>, vector<64x128xf32>, vector<8x128xf32> -> vector<8x128xf32>
    %24 = arith.addf %23, %5 : vector<8x128xf32>
    %25 = arith.negf %24 : vector<8x128xf32>
    %26 = math.exp %25 : vector<8x128xf32>
    %cst_23 = arith.constant 1.000000e+00 : f32
    %27 = vector.broadcast %cst_23 : f32 to vector<8x128xf32>
    %28 = arith.addf %27, %26 : vector<8x128xf32>
    %29 = arith.divf %27, %28 : vector<8x128xf32>
    %30 = math.tanh %24 : vector<8x128xf32>
    %31 = vector.extract_strided_slice %29 {offsets = [0, 0], sizes = [8, 32], strides = [1, 1]} : vector<8x128xf32> to vector<8x32xf32>
    %32 = vector.extract_strided_slice %29 {offsets = [0, 32], sizes = [8, 32], strides = [1, 1]} : vector<8x128xf32> to vector<8x32xf32>
    %33 = vector.extract_strided_slice %29 {offsets = [0, 96], sizes = [8, 32], strides = [1, 1]} : vector<8x128xf32> to vector<8x32xf32>
    %34 = vector.extract_strided_slice %30 {offsets = [0, 64], sizes = [8, 32], strides = [1, 1]} : vector<8x128xf32> to vector<8x32xf32>
    %35 = arith.mulf %32, %13 : vector<8x32xf32>
    %36 = arith.mulf %31, %34 : vector<8x32xf32>
    %37 = arith.addf %35, %36 : vector<8x32xf32>
    %38 = math.tanh %37 : vector<8x32xf32>
    %39 = arith.mulf %33, %38 : vector<8x32xf32>
    %40 = tpu.concatenate %39, %14 in 1 : vector<8x32xf32>, vector<8x32xf32> -> vector<8x64xf32>
    %c0_24 = arith.constant 0 : index
    %c0_25 = arith.constant 0 : index
    %41 = vector.load %arg4[%c0_24, %c0_25] : memref<64x128xf32, #tpu.memory_space<vmem>>, vector<64x128xf32>
    %cst_26 = arith.constant dense<0.000000e+00> : vector<8x128xf32>
    %42 = tpu.matmul %40, %41, %cst_26 {dimension_numbers = #tpu.dot_dimension_numbers<[1], [0], [0], [1], [0, 0, 1, 1], [], []>} : vector<8x64xf32>, vector<64x128xf32>, vector<8x128xf32> -> vector<8x128xf32>
    %43 = arith.addf %42, %8 : vector<8x128xf32>
    %44 = arith.negf %43 : vector<8x128xf32>
    %45 = math.exp %44 : vector<8x128xf32>
    %cst_27 = arith.constant 1.000000e+00 : f32
    %46 = vector.broadcast %cst_27 : f32 to vector<8x128xf32>
    %47 = arith.addf %46, %45 : vector<8x128xf32>
    %48 = arith.divf %46, %47 : vector<8x128xf32>
    %49 = math.tanh %43 : vector<8x128xf32>
    %50 = vector.extract_strided_slice %48 {offsets = [0, 0], sizes = [8, 32], strides = [1, 1]} : vector<8x128xf32> to vector<8x32xf32>
    %51 = vector.extract_strided_slice %48 {offsets = [0, 32], sizes = [8, 32], strides = [1, 1]} : vector<8x128xf32> to vector<8x32xf32>
    %52 = vector.extract_strided_slice %48 {offsets = [0, 96], sizes = [8, 32], strides = [1, 1]} : vector<8x128xf32> to vector<8x32xf32>
    %53 = vector.extract_strided_slice %49 {offsets = [0, 64], sizes = [8, 32], strides = [1, 1]} : vector<8x128xf32> to vector<8x32xf32>
    %54 = arith.mulf %51, %15 : vector<8x32xf32>
    %55 = arith.mulf %50, %53 : vector<8x32xf32>
    %56 = arith.addf %54, %55 : vector<8x32xf32>
    %57 = math.tanh %56 : vector<8x32xf32>
    %58 = arith.mulf %52, %57 : vector<8x32xf32>
    %59 = tpu.concatenate %58, %16 in 1 : vector<8x32xf32>, vector<8x32xf32> -> vector<8x64xf32>
    %c0_28 = arith.constant 0 : index
    %c0_29 = arith.constant 0 : index
    %60 = vector.load %arg6[%c0_28, %c0_29] : memref<64x128xf32, #tpu.memory_space<vmem>>, vector<64x128xf32>
    %cst_30 = arith.constant dense<0.000000e+00> : vector<8x128xf32>
    %61 = tpu.matmul %59, %60, %cst_30 {dimension_numbers = #tpu.dot_dimension_numbers<[1], [0], [0], [1], [0, 0, 1, 1], [], []>} : vector<8x64xf32>, vector<64x128xf32>, vector<8x128xf32> -> vector<8x128xf32>
    %62 = arith.addf %61, %11 : vector<8x128xf32>
    %63 = arith.negf %62 : vector<8x128xf32>
    %64 = math.exp %63 : vector<8x128xf32>
    %cst_31 = arith.constant 1.000000e+00 : f32
    %65 = vector.broadcast %cst_31 : f32 to vector<8x128xf32>
    %66 = arith.addf %65, %64 : vector<8x128xf32>
    %67 = arith.divf %65, %66 : vector<8x128xf32>
    %68 = math.tanh %62 : vector<8x128xf32>
    %69 = vector.extract_strided_slice %67 {offsets = [0, 0], sizes = [8, 32], strides = [1, 1]} : vector<8x128xf32> to vector<8x32xf32>
    %70 = vector.extract_strided_slice %67 {offsets = [0, 32], sizes = [8, 32], strides = [1, 1]} : vector<8x128xf32> to vector<8x32xf32>
    %71 = vector.extract_strided_slice %67 {offsets = [0, 96], sizes = [8, 32], strides = [1, 1]} : vector<8x128xf32> to vector<8x32xf32>
    %72 = vector.extract_strided_slice %68 {offsets = [0, 64], sizes = [8, 32], strides = [1, 1]} : vector<8x128xf32> to vector<8x32xf32>
    %73 = arith.mulf %70, %17 : vector<8x32xf32>
    %74 = arith.mulf %69, %72 : vector<8x32xf32>
    %75 = arith.addf %73, %74 : vector<8x32xf32>
    %76 = math.tanh %75 : vector<8x32xf32>
    %77 = arith.mulf %71, %76 : vector<8x32xf32>
    %c1_i32 = arith.constant 1 : i32
    %78 = arith.index_cast %c1_i32 : i32 to index
    %c0_32 = arith.constant 0 : index
    %c0_33 = arith.constant 0 : index
    %79 = vector.load %arg1[%78, %c0_32, %c0_33] : memref<4x8x32xf32, #tpu.memory_space<vmem>>, vector<1x8x32xf32>
    %80 = vector.shape_cast %79 : vector<1x8x32xf32> to vector<8x32xf32>
    %81 = tpu.concatenate %80, %39 in 1 : vector<8x32xf32>, vector<8x32xf32> -> vector<8x64xf32>
    %c0_34 = arith.constant 0 : index
    %c0_35 = arith.constant 0 : index
    %82 = vector.load %arg2[%c0_34, %c0_35] : memref<64x128xf32, #tpu.memory_space<vmem>>, vector<64x128xf32>
    %cst_36 = arith.constant dense<0.000000e+00> : vector<8x128xf32>
    %83 = tpu.matmul %81, %82, %cst_36 {dimension_numbers = #tpu.dot_dimension_numbers<[1], [0], [0], [1], [0, 0, 1, 1], [], []>} : vector<8x64xf32>, vector<64x128xf32>, vector<8x128xf32> -> vector<8x128xf32>
    %84 = arith.addf %83, %5 : vector<8x128xf32>
    %85 = arith.negf %84 : vector<8x128xf32>
    %86 = math.exp %85 : vector<8x128xf32>
    %cst_37 = arith.constant 1.000000e+00 : f32
    %87 = vector.broadcast %cst_37 : f32 to vector<8x128xf32>
    %88 = arith.addf %87, %86 : vector<8x128xf32>
    %89 = arith.divf %87, %88 : vector<8x128xf32>
    %90 = math.tanh %84 : vector<8x128xf32>
    %91 = vector.extract_strided_slice %89 {offsets = [0, 0], sizes = [8, 32], strides = [1, 1]} : vector<8x128xf32> to vector<8x32xf32>
    %92 = vector.extract_strided_slice %89 {offsets = [0, 32], sizes = [8, 32], strides = [1, 1]} : vector<8x128xf32> to vector<8x32xf32>
    %93 = vector.extract_strided_slice %89 {offsets = [0, 96], sizes = [8, 32], strides = [1, 1]} : vector<8x128xf32> to vector<8x32xf32>
    %94 = vector.extract_strided_slice %90 {offsets = [0, 64], sizes = [8, 32], strides = [1, 1]} : vector<8x128xf32> to vector<8x32xf32>
    %95 = arith.mulf %92, %37 : vector<8x32xf32>
    %96 = arith.mulf %91, %94 : vector<8x32xf32>
    %97 = arith.addf %95, %96 : vector<8x32xf32>
    %98 = math.tanh %97 : vector<8x32xf32>
    %99 = arith.mulf %93, %98 : vector<8x32xf32>
    %100 = tpu.concatenate %99, %58 in 1 : vector<8x32xf32>, vector<8x32xf32> -> vector<8x64xf32>
    %c0_38 = arith.constant 0 : index
    %c0_39 = arith.constant 0 : index
    %101 = vector.load %arg4[%c0_38, %c0_39] : memref<64x128xf32, #tpu.memory_space<vmem>>, vector<64x128xf32>
    %cst_40 = arith.constant dense<0.000000e+00> : vector<8x128xf32>
    %102 = tpu.matmul %100, %101, %cst_40 {dimension_numbers = #tpu.dot_dimension_numbers<[1], [0], [0], [1], [0, 0, 1, 1], [], []>} : vector<8x64xf32>, vector<64x128xf32>, vector<8x128xf32> -> vector<8x128xf32>
    %103 = arith.addf %102, %8 : vector<8x128xf32>
    %104 = arith.negf %103 : vector<8x128xf32>
    %105 = math.exp %104 : vector<8x128xf32>
    %cst_41 = arith.constant 1.000000e+00 : f32
    %106 = vector.broadcast %cst_41 : f32 to vector<8x128xf32>
    %107 = arith.addf %106, %105 : vector<8x128xf32>
    %108 = arith.divf %106, %107 : vector<8x128xf32>
    %109 = math.tanh %103 : vector<8x128xf32>
    %110 = vector.extract_strided_slice %108 {offsets = [0, 0], sizes = [8, 32], strides = [1, 1]} : vector<8x128xf32> to vector<8x32xf32>
    %111 = vector.extract_strided_slice %108 {offsets = [0, 32], sizes = [8, 32], strides = [1, 1]} : vector<8x128xf32> to vector<8x32xf32>
    %112 = vector.extract_strided_slice %108 {offsets = [0, 96], sizes = [8, 32], strides = [1, 1]} : vector<8x128xf32> to vector<8x32xf32>
    %113 = vector.extract_strided_slice %109 {offsets = [0, 64], sizes = [8, 32], strides = [1, 1]} : vector<8x128xf32> to vector<8x32xf32>
    %114 = arith.mulf %111, %56 : vector<8x32xf32>
    %115 = arith.mulf %110, %113 : vector<8x32xf32>
    %116 = arith.addf %114, %115 : vector<8x32xf32>
    %117 = math.tanh %116 : vector<8x32xf32>
    %118 = arith.mulf %112, %117 : vector<8x32xf32>
    %119 = tpu.concatenate %118, %77 in 1 : vector<8x32xf32>, vector<8x32xf32> -> vector<8x64xf32>
    %c0_42 = arith.constant 0 : index
    %c0_43 = arith.constant 0 : index
    %120 = vector.load %arg6[%c0_42, %c0_43] : memref<64x128xf32, #tpu.memory_space<vmem>>, vector<64x128xf32>
    %cst_44 = arith.constant dense<0.000000e+00> : vector<8x128xf32>
    %121 = tpu.matmul %119, %120, %cst_44 {dimension_numbers = #tpu.dot_dimension_numbers<[1], [0], [0], [1], [0, 0, 1, 1], [], []>} : vector<8x64xf32>, vector<64x128xf32>, vector<8x128xf32> -> vector<8x128xf32>
    %122 = arith.addf %121, %11 : vector<8x128xf32>
    %123 = arith.negf %122 : vector<8x128xf32>
    %124 = math.exp %123 : vector<8x128xf32>
    %cst_45 = arith.constant 1.000000e+00 : f32
    %125 = vector.broadcast %cst_45 : f32 to vector<8x128xf32>
    %126 = arith.addf %125, %124 : vector<8x128xf32>
    %127 = arith.divf %125, %126 : vector<8x128xf32>
    %128 = math.tanh %122 : vector<8x128xf32>
    %129 = vector.extract_strided_slice %127 {offsets = [0, 0], sizes = [8, 32], strides = [1, 1]} : vector<8x128xf32> to vector<8x32xf32>
    %130 = vector.extract_strided_slice %127 {offsets = [0, 32], sizes = [8, 32], strides = [1, 1]} : vector<8x128xf32> to vector<8x32xf32>
    %131 = vector.extract_strided_slice %127 {offsets = [0, 96], sizes = [8, 32], strides = [1, 1]} : vector<8x128xf32> to vector<8x32xf32>
    %132 = vector.extract_strided_slice %128 {offsets = [0, 64], sizes = [8, 32], strides = [1, 1]} : vector<8x128xf32> to vector<8x32xf32>
    %133 = arith.mulf %130, %75 : vector<8x32xf32>
    %134 = arith.mulf %129, %132 : vector<8x32xf32>
    %135 = arith.addf %133, %134 : vector<8x32xf32>
    %136 = math.tanh %135 : vector<8x32xf32>
    %137 = arith.mulf %131, %136 : vector<8x32xf32>
    %c2_i32 = arith.constant 2 : i32
    %138 = arith.index_cast %c2_i32 : i32 to index
    %c0_46 = arith.constant 0 : index
    %c0_47 = arith.constant 0 : index
    %139 = vector.load %arg1[%138, %c0_46, %c0_47] : memref<4x8x32xf32, #tpu.memory_space<vmem>>, vector<1x8x32xf32>
    %140 = vector.shape_cast %139 : vector<1x8x32xf32> to vector<8x32xf32>
    %141 = tpu.concatenate %140, %99 in 1 : vector<8x32xf32>, vector<8x32xf32> -> vector<8x64xf32>
    %c0_48 = arith.constant 0 : index
    %c0_49 = arith.constant 0 : index
    %142 = vector.load %arg2[%c0_48, %c0_49] : memref<64x128xf32, #tpu.memory_space<vmem>>, vector<64x128xf32>
    %cst_50 = arith.constant dense<0.000000e+00> : vector<8x128xf32>
    %143 = tpu.matmul %141, %142, %cst_50 {dimension_numbers = #tpu.dot_dimension_numbers<[1], [0], [0], [1], [0, 0, 1, 1], [], []>} : vector<8x64xf32>, vector<64x128xf32>, vector<8x128xf32> -> vector<8x128xf32>
    %144 = arith.addf %143, %5 : vector<8x128xf32>
    %145 = arith.negf %144 : vector<8x128xf32>
    %146 = math.exp %145 : vector<8x128xf32>
    %cst_51 = arith.constant 1.000000e+00 : f32
    %147 = vector.broadcast %cst_51 : f32 to vector<8x128xf32>
    %148 = arith.addf %147, %146 : vector<8x128xf32>
    %149 = arith.divf %147, %148 : vector<8x128xf32>
    %150 = math.tanh %144 : vector<8x128xf32>
    %151 = vector.extract_strided_slice %149 {offsets = [0, 0], sizes = [8, 32], strides = [1, 1]} : vector<8x128xf32> to vector<8x32xf32>
    %152 = vector.extract_strided_slice %149 {offsets = [0, 32], sizes = [8, 32], strides = [1, 1]} : vector<8x128xf32> to vector<8x32xf32>
    %153 = vector.extract_strided_slice %149 {offsets = [0, 96], sizes = [8, 32], strides = [1, 1]} : vector<8x128xf32> to vector<8x32xf32>
    %154 = vector.extract_strided_slice %150 {offsets = [0, 64], sizes = [8, 32], strides = [1, 1]} : vector<8x128xf32> to vector<8x32xf32>
    %155 = arith.mulf %152, %97 : vector<8x32xf32>
    %156 = arith.mulf %151, %154 : vector<8x32xf32>
    %157 = arith.addf %155, %156 : vector<8x32xf32>
    %158 = math.tanh %157 : vector<8x32xf32>
    %159 = arith.mulf %153, %158 : vector<8x32xf32>
    %160 = tpu.concatenate %159, %118 in 1 : vector<8x32xf32>, vector<8x32xf32> -> vector<8x64xf32>
    %c0_52 = arith.constant 0 : index
    %c0_53 = arith.constant 0 : index
    %161 = vector.load %arg4[%c0_52, %c0_53] : memref<64x128xf32, #tpu.memory_space<vmem>>, vector<64x128xf32>
    %cst_54 = arith.constant dense<0.000000e+00> : vector<8x128xf32>
    %162 = tpu.matmul %160, %161, %cst_54 {dimension_numbers = #tpu.dot_dimension_numbers<[1], [0], [0], [1], [0, 0, 1, 1], [], []>} : vector<8x64xf32>, vector<64x128xf32>, vector<8x128xf32> -> vector<8x128xf32>
    %163 = arith.addf %162, %8 : vector<8x128xf32>
    %164 = arith.negf %163 : vector<8x128xf32>
    %165 = math.exp %164 : vector<8x128xf32>
    %cst_55 = arith.constant 1.000000e+00 : f32
    %166 = vector.broadcast %cst_55 : f32 to vector<8x128xf32>
    %167 = arith.addf %166, %165 : vector<8x128xf32>
    %168 = arith.divf %166, %167 : vector<8x128xf32>
    %169 = math.tanh %163 : vector<8x128xf32>
    %170 = vector.extract_strided_slice %168 {offsets = [0, 0], sizes = [8, 32], strides = [1, 1]} : vector<8x128xf32> to vector<8x32xf32>
    %171 = vector.extract_strided_slice %168 {offsets = [0, 32], sizes = [8, 32], strides = [1, 1]} : vector<8x128xf32> to vector<8x32xf32>
    %172 = vector.extract_strided_slice %168 {offsets = [0, 96], sizes = [8, 32], strides = [1, 1]} : vector<8x128xf32> to vector<8x32xf32>
    %173 = vector.extract_strided_slice %169 {offsets = [0, 64], sizes = [8, 32], strides = [1, 1]} : vector<8x128xf32> to vector<8x32xf32>
    %174 = arith.mulf %171, %116 : vector<8x32xf32>
    %175 = arith.mulf %170, %173 : vector<8x32xf32>
    %176 = arith.addf %174, %175 : vector<8x32xf32>
    %177 = math.tanh %176 : vector<8x32xf32>
    %178 = arith.mulf %172, %177 : vector<8x32xf32>
    %179 = tpu.concatenate %178, %137 in 1 : vector<8x32xf32>, vector<8x32xf32> -> vector<8x64xf32>
    %c0_56 = arith.constant 0 : index
    %c0_57 = arith.constant 0 : index
    %180 = vector.load %arg6[%c0_56, %c0_57] : memref<64x128xf32, #tpu.memory_space<vmem>>, vector<64x128xf32>
    %cst_58 = arith.constant dense<0.000000e+00> : vector<8x128xf32>
    %181 = tpu.matmul %179, %180, %cst_58 {dimension_numbers = #tpu.dot_dimension_numbers<[1], [0], [0], [1], [0, 0, 1, 1], [], []>} : vector<8x64xf32>, vector<64x128xf32>, vector<8x128xf32> -> vector<8x128xf32>
    %182 = arith.addf %181, %11 : vector<8x128xf32>
    %183 = arith.negf %182 : vector<8x128xf32>
    %184 = math.exp %183 : vector<8x128xf32>
    %cst_59 = arith.constant 1.000000e+00 : f32
    %185 = vector.broadcast %cst_59 : f32 to vector<8x128xf32>
    %186 = arith.addf %185, %184 : vector<8x128xf32>
    %187 = arith.divf %185, %186 : vector<8x128xf32>
    %188 = math.tanh %182 : vector<8x128xf32>
    %189 = vector.extract_strided_slice %187 {offsets = [0, 0], sizes = [8, 32], strides = [1, 1]} : vector<8x128xf32> to vector<8x32xf32>
    %190 = vector.extract_strided_slice %187 {offsets = [0, 32], sizes = [8, 32], strides = [1, 1]} : vector<8x128xf32> to vector<8x32xf32>
    %191 = vector.extract_strided_slice %187 {offsets = [0, 96], sizes = [8, 32], strides = [1, 1]} : vector<8x128xf32> to vector<8x32xf32>
    %192 = vector.extract_strided_slice %188 {offsets = [0, 64], sizes = [8, 32], strides = [1, 1]} : vector<8x128xf32> to vector<8x32xf32>
    %193 = arith.mulf %190, %135 : vector<8x32xf32>
    %194 = arith.mulf %189, %192 : vector<8x32xf32>
    %195 = arith.addf %193, %194 : vector<8x32xf32>
    %196 = math.tanh %195 : vector<8x32xf32>
    %197 = arith.mulf %191, %196 : vector<8x32xf32>
    %c3_i32 = arith.constant 3 : i32
    %198 = arith.index_cast %c3_i32 : i32 to index
    %c0_60 = arith.constant 0 : index
    %c0_61 = arith.constant 0 : index
    %199 = vector.load %arg1[%198, %c0_60, %c0_61] : memref<4x8x32xf32, #tpu.memory_space<vmem>>, vector<1x8x32xf32>
    %200 = vector.shape_cast %199 : vector<1x8x32xf32> to vector<8x32xf32>
    %201 = tpu.concatenate %200, %159 in 1 : vector<8x32xf32>, vector<8x32xf32> -> vector<8x64xf32>
    %c0_62 = arith.constant 0 : index
    %c0_63 = arith.constant 0 : index
    %202 = vector.load %arg2[%c0_62, %c0_63] : memref<64x128xf32, #tpu.memory_space<vmem>>, vector<64x128xf32>
    %cst_64 = arith.constant dense<0.000000e+00> : vector<8x128xf32>
    %203 = tpu.matmul %201, %202, %cst_64 {dimension_numbers = #tpu.dot_dimension_numbers<[1], [0], [0], [1], [0, 0, 1, 1], [], []>} : vector<8x64xf32>, vector<64x128xf32>, vector<8x128xf32> -> vector<8x128xf32>
    %204 = arith.addf %203, %5 : vector<8x128xf32>
    %205 = arith.negf %204 : vector<8x128xf32>
    %206 = math.exp %205 : vector<8x128xf32>
    %cst_65 = arith.constant 1.000000e+00 : f32
    %207 = vector.broadcast %cst_65 : f32 to vector<8x128xf32>
    %208 = arith.addf %207, %206 : vector<8x128xf32>
    %209 = arith.divf %207, %208 : vector<8x128xf32>
    %210 = math.tanh %204 : vector<8x128xf32>
    %211 = vector.extract_strided_slice %209 {offsets = [0, 0], sizes = [8, 32], strides = [1, 1]} : vector<8x128xf32> to vector<8x32xf32>
    %212 = vector.extract_strided_slice %209 {offsets = [0, 32], sizes = [8, 32], strides = [1, 1]} : vector<8x128xf32> to vector<8x32xf32>
    %213 = vector.extract_strided_slice %209 {offsets = [0, 96], sizes = [8, 32], strides = [1, 1]} : vector<8x128xf32> to vector<8x32xf32>
    %214 = vector.extract_strided_slice %210 {offsets = [0, 64], sizes = [8, 32], strides = [1, 1]} : vector<8x128xf32> to vector<8x32xf32>
    %215 = arith.mulf %212, %157 : vector<8x32xf32>
    %216 = arith.mulf %211, %214 : vector<8x32xf32>
    %217 = arith.addf %215, %216 : vector<8x32xf32>
    %218 = math.tanh %217 : vector<8x32xf32>
    %219 = arith.mulf %213, %218 : vector<8x32xf32>
    %220 = tpu.concatenate %219, %178 in 1 : vector<8x32xf32>, vector<8x32xf32> -> vector<8x64xf32>
    %c0_66 = arith.constant 0 : index
    %c0_67 = arith.constant 0 : index
    %221 = vector.load %arg4[%c0_66, %c0_67] : memref<64x128xf32, #tpu.memory_space<vmem>>, vector<64x128xf32>
    %cst_68 = arith.constant dense<0.000000e+00> : vector<8x128xf32>
    %222 = tpu.matmul %220, %221, %cst_68 {dimension_numbers = #tpu.dot_dimension_numbers<[1], [0], [0], [1], [0, 0, 1, 1], [], []>} : vector<8x64xf32>, vector<64x128xf32>, vector<8x128xf32> -> vector<8x128xf32>
    %223 = arith.addf %222, %8 : vector<8x128xf32>
    %224 = arith.negf %223 : vector<8x128xf32>
    %225 = math.exp %224 : vector<8x128xf32>
    %cst_69 = arith.constant 1.000000e+00 : f32
    %226 = vector.broadcast %cst_69 : f32 to vector<8x128xf32>
    %227 = arith.addf %226, %225 : vector<8x128xf32>
    %228 = arith.divf %226, %227 : vector<8x128xf32>
    %229 = math.tanh %223 : vector<8x128xf32>
    %230 = vector.extract_strided_slice %228 {offsets = [0, 0], sizes = [8, 32], strides = [1, 1]} : vector<8x128xf32> to vector<8x32xf32>
    %231 = vector.extract_strided_slice %228 {offsets = [0, 32], sizes = [8, 32], strides = [1, 1]} : vector<8x128xf32> to vector<8x32xf32>
    %232 = vector.extract_strided_slice %228 {offsets = [0, 96], sizes = [8, 32], strides = [1, 1]} : vector<8x128xf32> to vector<8x32xf32>
    %233 = vector.extract_strided_slice %229 {offsets = [0, 64], sizes = [8, 32], strides = [1, 1]} : vector<8x128xf32> to vector<8x32xf32>
    %234 = arith.mulf %231, %176 : vector<8x32xf32>
    %235 = arith.mulf %230, %233 : vector<8x32xf32>
    %236 = arith.addf %234, %235 : vector<8x32xf32>
    %237 = math.tanh %236 : vector<8x32xf32>
    %238 = arith.mulf %232, %237 : vector<8x32xf32>
    %239 = tpu.concatenate %238, %197 in 1 : vector<8x32xf32>, vector<8x32xf32> -> vector<8x64xf32>
    %c0_70 = arith.constant 0 : index
    %c0_71 = arith.constant 0 : index
    %240 = vector.load %arg6[%c0_70, %c0_71] : memref<64x128xf32, #tpu.memory_space<vmem>>, vector<64x128xf32>
    %cst_72 = arith.constant dense<0.000000e+00> : vector<8x128xf32>
    %241 = tpu.matmul %239, %240, %cst_72 {dimension_numbers = #tpu.dot_dimension_numbers<[1], [0], [0], [1], [0, 0, 1, 1], [], []>} : vector<8x64xf32>, vector<64x128xf32>, vector<8x128xf32> -> vector<8x128xf32>
    %242 = arith.addf %241, %11 : vector<8x128xf32>
    %243 = arith.negf %242 : vector<8x128xf32>
    %244 = math.exp %243 : vector<8x128xf32>
    %cst_73 = arith.constant 1.000000e+00 : f32
    %245 = vector.broadcast %cst_73 : f32 to vector<8x128xf32>
    %246 = arith.addf %245, %244 : vector<8x128xf32>
    %247 = arith.divf %245, %246 : vector<8x128xf32>
    %248 = math.tanh %242 : vector<8x128xf32>
    %249 = vector.extract_strided_slice %247 {offsets = [0, 0], sizes = [8, 32], strides = [1, 1]} : vector<8x128xf32> to vector<8x32xf32>
    %250 = vector.extract_strided_slice %247 {offsets = [0, 32], sizes = [8, 32], strides = [1, 1]} : vector<8x128xf32> to vector<8x32xf32>
    %251 = vector.extract_strided_slice %247 {offsets = [0, 96], sizes = [8, 32], strides = [1, 1]} : vector<8x128xf32> to vector<8x32xf32>
    %252 = vector.extract_strided_slice %248 {offsets = [0, 64], sizes = [8, 32], strides = [1, 1]} : vector<8x128xf32> to vector<8x32xf32>
    %253 = arith.mulf %250, %195 : vector<8x32xf32>
    %254 = arith.mulf %249, %252 : vector<8x32xf32>
    %255 = arith.addf %253, %254 : vector<8x32xf32>
    %256 = math.tanh %255 : vector<8x32xf32>
    %257 = arith.mulf %251, %256 : vector<8x32xf32>
    %c4_i32 = arith.constant 4 : i32
    %c0_74 = arith.constant 0 : index
    %c0_75 = arith.constant 0 : index
    %258 = vector.load %arg11[%c0_74, %c0_75] : memref<8x32xf32, #tpu.memory_space<vmem>>, vector<8x32xf32>
    tpu.vector_store %arg11[%c0_74, %c0_75], %219 {strides = array<i32>} : memref<8x32xf32, #tpu.memory_space<vmem>>, vector<8x32xf32>,
    %c0_76 = arith.constant 0 : index
    %c0_77 = arith.constant 0 : index
    %259 = vector.load %arg12[%c0_76, %c0_77] : memref<8x32xf32, #tpu.memory_space<vmem>>, vector<8x32xf32>
    tpu.vector_store %arg12[%c0_76, %c0_77], %217 {strides = array<i32>} : memref<8x32xf32, #tpu.memory_space<vmem>>, vector<8x32xf32>,
    %c0_78 = arith.constant 0 : index
    %c0_79 = arith.constant 0 : index
    %260 = vector.load %arg13[%c0_78, %c0_79] : memref<8x32xf32, #tpu.memory_space<vmem>>, vector<8x32xf32>
    tpu.vector_store %arg13[%c0_78, %c0_79], %238 {strides = array<i32>} : memref<8x32xf32, #tpu.memory_space<vmem>>, vector<8x32xf32>,
    %c0_80 = arith.constant 0 : index
    %c0_81 = arith.constant 0 : index
    %261 = vector.load %arg14[%c0_80, %c0_81] : memref<8x32xf32, #tpu.memory_space<vmem>>, vector<8x32xf32>
    tpu.vector_store %arg14[%c0_80, %c0_81], %236 {strides = array<i32>} : memref<8x32xf32, #tpu.memory_space<vmem>>, vector<8x32xf32>,
    %c0_82 = arith.constant 0 : index
    %c0_83 = arith.constant 0 : index
    %262 = vector.load %arg15[%c0_82, %c0_83] : memref<8x32xf32, #tpu.memory_space<vmem>>, vector<8x32xf32>
    tpu.vector_store %arg15[%c0_82, %c0_83], %257 {strides = array<i32>} : memref<8x32xf32, #tpu.memory_space<vmem>>, vector<8x32xf32>,
    %c0_84 = arith.constant 0 : index
    %c0_85 = arith.constant 0 : index
    %263 = vector.load %arg16[%c0_84, %c0_85] : memref<8x32xf32, #tpu.memory_space<vmem>>, vector<8x32xf32>
    tpu.vector_store %arg16[%c0_84, %c0_85], %255 {strides = array<i32>} : memref<8x32xf32, #tpu.memory_space<vmem>>, vector<8x32xf32>,
    %c1_i32_86 = arith.constant 1 : i32
    %264 = arith.cmpi eq, %arg0, %c1_i32_86 : i32
    %265 = arith.extui %264 : i1 to i32
    %c0_i32_87 = arith.constant 0 : i32
    %266 = arith.cmpi ne, %265, %c0_i32_87 : i32
    scf.if %266 {
      %c0_88 = arith.constant 0 : index
      %c0_89 = arith.constant 0 : index
      %267 = vector.load %arg8[%c0_88, %c0_89] : memref<32x32xf32, #tpu.memory_space<vmem>>, vector<32x32xf32>
      %cst_90 = arith.constant dense<0.000000e+00> : vector<8x32xf32>
      %268 = tpu.matmul %257, %267, %cst_90 {dimension_numbers = #tpu.dot_dimension_numbers<[1], [0], [0], [1], [0, 0, 1, 1], [], []>} : vector<8x32xf32>, vector<32x32xf32>, vector<8x32xf32> -> vector<8x32xf32>
      %c0_91 = arith.constant 0 : index
      %c0_92 = arith.constant 0 : index
      %269 = vector.load %arg9[%c0_91, %c0_92] : memref<1x32xf32, #tpu.memory_space<vmem>>, vector<1x32xf32>
      %270 = vector.broadcast %269 : vector<1x32xf32> to vector<8x32xf32>
      %271 = arith.addf %268, %270 : vector<8x32xf32>
      %cst_93 = arith.constant 0.000000e+00 : f32
      %272 = vector.broadcast %cst_93 : f32 to vector<8x32xf32>
      %273 = arith.maximumf %271, %272 : vector<8x32xf32>
      %274 = arith.mulf %273, %273 : vector<8x32xf32>
      %cst_94 = arith.constant dense<0.000000e+00> : vector<8xf32>
      %275 = vector.multi_reduction <add>, %274, %cst_94 [1] : vector<8x32xf32> to vector<8xf32>
      %276 = vector.shape_cast %275 : vector<8xf32> to vector<8x1xf32>
      %cst_95 = arith.constant 1.000000e-24 : f32
      %277 = vector.broadcast %cst_95 : f32 to vector<8x1xf32>
      %278 = arith.maximumf %276, %277 : vector<8x1xf32>
      %279 = math.rsqrt %278 : vector<8x1xf32>
      %280 = vector.broadcast %279 : vector<8x1xf32> to vector<8x32xf32>
      %281 = arith.mulf %273, %280 : vector<8x32xf32>
      %c0_96 = arith.constant 0 : index
      %c0_97 = arith.constant 0 : index
      %282 = vector.load %arg10[%c0_96, %c0_97] : memref<8x32xf32, #tpu.memory_space<vmem>>, vector<8x32xf32>
      tpu.vector_store %arg10[%c0_96, %c0_97], %281 {strides = array<i32>} : memref<8x32xf32, #tpu.memory_space<vmem>>, vector<8x32xf32>,
    } else {
    }
    return
  }
  func.func @transform_0(%arg0: i32) -> (i32, i32, i32) {
    %c0_i32 = arith.constant 0 : i32
    %c0_i32_0 = arith.constant 0 : i32
    %c0_i32_1 = arith.constant 0 : i32
    return %arg0, %c0_i32, %c0_i32_0 : i32, i32, i32
  }
  func.func @transform_1(%arg0: i32) -> (i32, i32) {
    %c0_i32 = arith.constant 0 : i32
    %c0_i32_0 = arith.constant 0 : i32
    %c0_i32_1 = arith.constant 0 : i32
    return %c0_i32, %c0_i32_0 : i32, i32
  }
  func.func @transform_2(%arg0: i32) -> (i32, i32) {
    %c0_i32 = arith.constant 0 : i32
    %c0_i32_0 = arith.constant 0 : i32
    %c0_i32_1 = arith.constant 0 : i32
    return %c0_i32, %c0_i32_0 : i32, i32
  }
  func.func @transform_3(%arg0: i32) -> (i32, i32) {
    %c0_i32 = arith.constant 0 : i32
    %c0_i32_0 = arith.constant 0 : i32
    %c0_i32_1 = arith.constant 0 : i32
    return %c0_i32, %c0_i32_0 : i32, i32
  }
  func.func @transform_4(%arg0: i32) -> (i32, i32) {
    %c0_i32 = arith.constant 0 : i32
    %c0_i32_0 = arith.constant 0 : i32
    %c0_i32_1 = arith.constant 0 : i32
    return %c0_i32, %c0_i32_0 : i32, i32
  }
  func.func @transform_5(%arg0: i32) -> (i32, i32) {
    %c0_i32 = arith.constant 0 : i32
    %c0_i32_0 = arith.constant 0 : i32
    %c0_i32_1 = arith.constant 0 : i32
    return %c0_i32, %c0_i32_0 : i32, i32
  }
  func.func @transform_6(%arg0: i32) -> (i32, i32) {
    %c0_i32 = arith.constant 0 : i32
    %c0_i32_0 = arith.constant 0 : i32
    %c0_i32_1 = arith.constant 0 : i32
    return %c0_i32, %c0_i32_0 : i32, i32
  }
  func.func @transform_7(%arg0: i32) -> (i32, i32) {
    %c0_i32 = arith.constant 0 : i32
    %c0_i32_0 = arith.constant 0 : i32
    %c0_i32_1 = arith.constant 0 : i32
    return %c0_i32, %c0_i32_0 : i32, i32
  }
  func.func @transform_8(%arg0: i32) -> (i32, i32) {
    %c0_i32 = arith.constant 0 : i32
    %c0_i32_0 = arith.constant 0 : i32
    %c0_i32_1 = arith.constant 0 : i32
    return %c0_i32, %c0_i32_0 : i32, i32
  }
  func.func @transform_9(%arg0: i32) -> (i32, i32) {
    %c0_i32 = arith.constant 0 : i32
    %c0_i32_0 = arith.constant 0 : i32
    %c0_i32_1 = arith.constant 0 : i32
    return %c0_i32, %c0_i32_0 : i32, i32
  }
}

</mosaic_0001>

<llo_original>
// kernel: tpu_custom_call.1
$region0: #{tpu_custom_call.1}
  #allocation0 [shape = 'u32[]', space=smem, size = 0x4, offset = 0x4, fixed_abs, tag = 'smem constant byte address 0x4 - core index']
  #allocation1 [shape = 'u32[72,128]{1,0:T(1,128)}', space=vmem, size = 0x9000, scoped, tag = 'internal scratch']
  #allocation2 [shape = 'f32[8,32]{1,0:T(8,128)}', space=vmem, size = 0x1000, scoped, tag = 'scratch operand']
  #allocation3 [shape = 'f32[8,32]{1,0:T(8,128)}', space=vmem, size = 0x1000, scoped, tag = 'scratch operand']
  #allocation4 [shape = 'f32[8,32]{1,0:T(8,128)}', space=vmem, size = 0x1000, scoped, tag = 'scratch operand']
  #allocation5 [shape = 'f32[8,32]{1,0:T(8,128)}', space=vmem, size = 0x1000, scoped, tag = 'scratch operand']
  #allocation6 [shape = 'f32[8,32]{1,0:T(8,128)}', space=vmem, size = 0x1000, scoped, tag = 'scratch operand']
  #allocation7 [shape = 'f32[8,32]{1,0:T(8,128)}', space=vmem, size = 0x1000, scoped, tag = 'scratch operand']
  %s0 = inlined_call_operand.hbm [shape: f32[8,8,32], index: 0, kind: input, shape index: {}]
  %s1 = inlined_call_operand.hbm [shape: f32[64,128], index: 1, kind: input, shape index: {}]
  %s2 = inlined_call_operand.vmem [shape: f32[1,128], index: 2, kind: input, shape index: {}]
  %s3 = inlined_call_operand.hbm [shape: f32[64,128], index: 3, kind: input, shape index: {}]
  %s4 = inlined_call_operand.vmem [shape: f32[1,128], index: 4, kind: input, shape index: {}]
  %s5 = inlined_call_operand.hbm [shape: f32[64,128], index: 5, kind: input, shape index: {}]
  %s6 = inlined_call_operand.vmem [shape: f32[1,128], index: 6, kind: input, shape index: {}]
  %s7 = inlined_call_operand.hbm [shape: f32[32,32], index: 7, kind: input, shape index: {}]
  %s8 = inlined_call_operand.vmem [shape: f32[1,32], index: 8, kind: input, shape index: {}]
  %s9 = inlined_call_operand.hbm [shape: f32[8,32], index: 9, kind: output, shape index: {}]
  %s10 = sld [smem:[#allocation0]]
  $region97: #{tpu_custom_call.1} parent=0
    _
  %s12 = ssub.s32 1, %s10
  %s13 = scalar_select 0, %s12, %s10
  $region1: #{tpu_custom_call.1} parent=0
    #allocation8 [shape = 'u8[32768]{0}', space=vmem, size = 0x8000, scoped, tag = 'input window, operand 0']
    #allocation9 [shape = 's32[2]{0}', space=sflag, size = 0x8, scoped, tag = 'scoped memory for tpu_custom_call.1']
    #allocation10 [shape = 's32[2]{0}', space=sflag, size = 0x8, scoped, tag = 'scoped memory for tpu_custom_call.1']
    #allocation11 [shape = 'u8[32768]{0}', space=vmem, size = 0x8000, scoped, tag = 'input window, operand 1, single buffered']
    #allocation12 [shape = 's32[1]{0}', space=sflag, size = 0x4, scoped, tag = 'scoped memory for tpu_custom_call.1']
    #allocation13 [shape = 'u8[32768]{0}', space=vmem, size = 0x8000, scoped, tag = 'input window, operand 3, single buffered']
    #allocation14 [shape = 'u8[32768]{0}', space=vmem, size = 0x8000, scoped, tag = 'input window, operand 5, single buffered']
    #allocation15 [shape = 's32[1]{0}', space=sflag, size = 0x4, scoped, tag = 'scoped memory for tpu_custom_call.1']
    #allocation16 [shape = 'u8[16384]{0}', space=vmem, size = 0x4000, scoped, tag = 'input window, operand 7, single buffered']
    #allocation17 [shape = 'u8[4096]{0}', space=vmem, size = 0x1000, scoped, tag = 'output window, operand 0, single buffered']
    %14 = vsyncpa [#allocation9], 0
    %s15 = scalar_lea.sflag [#allocation9], 1
    %16 = vsyncpa %s15, 0
    %17 = vsyncpa [#allocation12], 0
    %18 = vsyncpa [#allocation15], 0
    %19 = vsyncpa [#allocation10], 0
    loop: start=0, step=1, limit=4
    $region2: #{tpu_custom_call.1} parent=1 // loop_pre_header
      _
    $region3: #{tpu_custom_call.1} parent=1 // loop_header
      %s21 = sphi 0, %s25
      %p22 = scmp.ge.s32.totalorder %s21, 4
      %s31 = sphi 0, %s33
      %s34 = sphi 0, %s31
      %s35 = sphi 0, %s34
      %s51 = sphi 0, %s35
      %s55 = sphi 0, %s55
      %s57 = sphi 0, %s55
      %s58 = sphi 0, %s57
      %s72 = sphi 0, %s58
      %s76 = sphi 0, %s76
      %s78 = sphi 0, %s76
      %s79 = sphi 0, %s78
      %s93 = sphi 0, %s79
      %s97 = sphi 0, %s97
      %s99 = sphi 0, %s97
      %s100 = sphi 0, %s99
      %s114 = sphi 0, %s100
      %s118 = sphi 0, %s118
      %s120 = sphi 0, %s118
      %s121 = sphi 0, %s120
      %s135 = sphi 0, %s121
      %s139 = sphi 0, %s139
      %s141 = sphi 0, %s139
      %s142 = sphi 0, %s141
      %s156 = sphi 0, %s142
      %s160 = sphi 0, %s160
      %s162 = sphi 0, %s160
      %s163 = sphi 0, %s162
      %s177 = sphi 0, %s163
      %s181 = sphi 0, %s181
      %s183 = sphi 0, %s181
      %s184 = sphi 0, %s183
      %s198 = sphi 0, %s184
      %s202 = sphi 0, %s202
      %s204 = sphi 0, %s202
      %s205 = sphi 0, %s204
      %s219 = sphi 0, %s205
      %s223 = sphi 0, %s223
      %s225 = sphi 0, %s223
      %s226 = sphi 0, %s225
      %s240 = sphi 0, %s226
    $region4: #{tpu_custom_call.1} parent=1 // loop_header_branch
      %24 = sbr.rel (%p22) target = $region8
    $region5: #{tpu_custom_call.1} parent=1 // loop_body
      %s26 = ssub.s32 %s21, 1
      %s27 = ssub.s32 %s21, 2
      %s28 = sadd.s32 %s21, 1
      %s29 = ssub.s32 %s21, %s28
      %p30 = scmp.eq.s32.totalorder %s29, 0
      %s32 = sadd.s32 %s31, 1
      %s33 = scalar_select %p30, %s31, %s32
      %p36 = pneg %p30
      %p37 = scmp.eq.s32.totalorder %s21, 1
      %p38 = por %p36, %p37
      %p39 = scmp.ne.s32.totalorder %s31, %s34
      %p40 = scmp.eq.s32.totalorder %s21, 0
      %p41 = por %p39, %p40
      %p42 = scmp.ne.s32.totalorder %s31, %s34
      %p43 = scmp.eq.s32.totalorder %s26, 1
      %p44 = por %p42, %p43
      %p45 = scmp.ne.s32.totalorder %s34, %s35
      %p46 = scmp.eq.s32.totalorder %s26, 0
      %p47 = por %p45, %p46
      %p48 = scmp.ne.s32.totalorder %s34, %s35
      %p49 = scmp.eq.s32.totalorder %s27, 1
      %p50 = por %p48, %p49
      %p52 = scmp.ne.s32.totalorder %s35, %s51
      %p53 = scmp.eq.s32.totalorder %s27, 0
      %p54 = por %p52, %p53
      %s56 = sadd.s32 %s55, 1
      %p59 = scmp.eq.s32.totalorder %s21, 1
      %p60 = scmp.ne.s32.totalorder %s55, %s57
      %p61 = scmp.eq.s32.totalorder %s21, 0
      %p62 = por %p60, %p61
      %p63 = scmp.ne.s32.totalorder %s55, %s57
      %p64 = scmp.eq.s32.totalorder %s26, 1
      %p65 = por %p63, %p64
      %p66 = scmp.ne.s32.totalorder %s57, %s58
      %p67 = scmp.eq.s32.totalorder %s26, 0
      %p68 = por %p66, %p67
      %p69 = scmp.ne.s32.totalorder %s57, %s58
      %p70 = scmp.eq.s32.totalorder %s27, 1
      %p71 = por %p69, %p70
      %p73 = scmp.ne.s32.totalorder %s58, %s72
      %p74 = scmp.eq.s32.totalorder %s27, 0
      %p75 = por %p73, %p74
      %s77 = sadd.s32 %s76, 1
      %p80 = scmp.eq.s32.totalorder %s21, 1
      %p81 = scmp.ne.s32.totalorder %s76, %s78
      %p82 = scmp.eq.s32.totalorder %s21, 0
      %p83 = por %p81, %p82
      %p84 = scmp.ne.s32.totalorder %s76, %s78
      %p85 = scmp.eq.s32.totalorder %s26, 1
      %p86 = por %p84, %p85
      %p87 = scmp.ne.s32.totalorder %s78, %s79
      %p88 = scmp.eq.s32.totalorder %s26, 0
      %p89 = por %p87, %p88
      %p90 = scmp.ne.s32.totalorder %s78, %s79
      %p91 = scmp.eq.s32.totalorder %s27, 1
      %p92 = por %p90, %p91
      %p94 = scmp.ne.s32.totalorder %s79, %s93
      %p95 = scmp.eq.s32.totalorder %s27, 0
      %p96 = por %p94, %p95
      %s98 = sadd.s32 %s97, 1
      %p101 = scmp.eq.s32.totalorder %s21, 1
      %p102 = scmp.ne.s32.totalorder %s97, %s99
      %p103 = scmp.eq.s32.totalorder %s21, 0
      %p104 = por %p102, %p103
      %p105 = scmp.ne.s32.totalorder %s97, %s99
      %p106 = scmp.eq.s32.totalorder %s26, 1
      %p107 = por %p105, %p106
      %p108 = scmp.ne.s32.totalorder %s99, %s100
      %p109 = scmp.eq.s32.totalorder %s26, 0
      %p110 = por %p108, %p109
      %p111 = scmp.ne.s32.totalorder %s99, %s100
      %p112 = scmp.eq.s32.totalorder %s27, 1
      %p113 = por %p111, %p112
      %p115 = scmp.ne.s32.totalorder %s100, %s114
      %p116 = scmp.eq.s32.totalorder %s27, 0
      %p117 = por %p115, %p116
      %s119 = sadd.s32 %s118, 1
      %p122 = scmp.eq.s32.totalorder %s21, 1
      %p123 = scmp.ne.s32.totalorder %s118, %s120
      %p124 = scmp.eq.s32.totalorder %s21, 0
      %p125 = por %p123, %p124
      %p126 = scmp.ne.s32.totalorder %s118, %s120
      %p127 = scmp.eq.s32.totalorder %s26, 1
      %p128 = por %p126, %p127
      %p129 = scmp.ne.s32.totalorder %s120, %s121
      %p130 = scmp.eq.s32.totalorder %s26, 0
      %p131 = por %p129, %p130
      %p132 = scmp.ne.s32.totalorder %s120, %s121
      %p133 = scmp.eq.s32.totalorder %s27, 1
      %p134 = por %p132, %p133
      %p136 = scmp.ne.s32.totalorder %s121, %s135
      %p137 = scmp.eq.s32.totalorder %s27, 0
      %p138 = por %p136, %p137
      %s140 = sadd.s32 %s139, 1
      %p143 = scmp.eq.s32.totalorder %s21, 1
      %p144 = scmp.ne.s32.totalorder %s139, %s141
      %p145 = scmp.eq.s32.totalorder %s21, 0
      %p146 = por %p144, %p145
      %p147 = scmp.ne.s32.totalorder %s139, %s141
      %p148 = scmp.eq.s32.totalorder %s26, 1
      %p149 = por %p147, %p148
      %p150 = scmp.ne.s32.totalorder %s141, %s142
      %p151 = scmp.eq.s32.totalorder %s26, 0
      %p152 = por %p150, %p151
      %p153 = scmp.ne.s32.totalorder %s141, %s142
      %p154 = scmp.eq.s32.totalorder %s27, 1
      %p155 = por %p153, %p154
      %p157 = scmp.ne.s32.totalorder %s142, %s156
      %p158 = scmp.eq.s32.totalorder %s27, 0
      %p159 = por %p157, %p158
      %s161 = sadd.s32 %s160, 1
      %p164 = scmp.eq.s32.totalorder %s21, 1
      %p165 = scmp.ne.s32.totalorder %s160, %s162
      %p166 = scmp.eq.s32.totalorder %s21, 0
      %p167 = por %p165, %p166
      %p168 = scmp.ne.s32.totalorder %s160, %s162
      %p169 = scmp.eq.s32.totalorder %s26, 1
      %p170 = por %p168, %p169
      %p171 = scmp.ne.s32.totalorder %s162, %s163
      %p172 = scmp.eq.s32.totalorder %s26, 0
      %p173 = por %p171, %p172
      %p174 = scmp.ne.s32.totalorder %s162, %s163
      %p175 = scmp.eq.s32.totalorder %s27, 1
      %p176 = por %p174, %p175
      %p178 = scmp.ne.s32.totalorder %s163, %s177
      %p179 = scmp.eq.s32.totalorder %s27, 0
      %p180 = por %p178, %p179
      %s182 = sadd.s32 %s181, 1
      %p185 = scmp.eq.s32.totalorder %s21, 1
      %p186 = scmp.ne.s32.totalorder %s181, %s183
      %p187 = scmp.eq.s32.totalorder %s21, 0
      %p188 = por %p186, %p187
      %p189 = scmp.ne.s32.totalorder %s181, %s183
      %p190 = scmp.eq.s32.totalorder %s26, 1
      %p191 = por %p189, %p190
      %p192 = scmp.ne.s32.totalorder %s183, %s184
      %p193 = scmp.eq.s32.totalorder %s26, 0
      %p194 = por %p192, %p193
      %p195 = scmp.ne.s32.totalorder %s183, %s184
      %p196 = scmp.eq.s32.totalorder %s27, 1
      %p197 = por %p195, %p196
      %p199 = scmp.ne.s32.totalorder %s184, %s198
      %p200 = scmp.eq.s32.totalorder %s27, 0
      %p201 = por %p199, %p200
      %s203 = sadd.s32 %s202, 1
      %p206 = scmp.eq.s32.totalorder %s21, 1
      %p207 = scmp.ne.s32.totalorder %s202, %s204
      %p208 = scmp.eq.s32.totalorder %s21, 0
      %p209 = por %p207, %p208
      %p210 = scmp.ne.s32.totalorder %s202, %s204
      %p211 = scmp.eq.s32.totalorder %s26, 1
      %p212 = por %p210, %p211
      %p213 = scmp.ne.s32.totalorder %s204, %s205
      %p214 = scmp.eq.s32.totalorder %s26, 0
      %p215 = por %p213, %p214
      %p216 = scmp.ne.s32.totalorder %s204, %s205
      %p217 = scmp.eq.s32.totalorder %s27, 1
      %p218 = por %p216, %p217
      %p220 = scmp.ne.s32.totalorder %s205, %s219
      %p221 = scmp.eq.s32.totalorder %s27, 0
      %p222 = por %p220, %p221
      %s224 = sadd.s32 %s223, 1
      %p227 = scmp.eq.s32.totalorder %s21, 1
      %p228 = scmp.ne.s32.totalorder %s223, %s225
      %p229 = scmp.eq.s32.totalorder %s21, 0
      %p230 = por %p228, %p229
      %p231 = scmp.ne.s32.totalorder %s223, %s225
      %p232 = scmp.eq.s32.totalorder %s26, 1
      %p233 = por %p231, %p232
      %p234 = scmp.ne.s32.totalorder %s225, %s226
      %p235 = scmp.eq.s32.totalorder %s26, 0
      %p236 = por %p234, %p235
      %p237 = scmp.ne.s32.totalorder %s225, %s226
      %p238 = scmp.eq.s32.totalorder %s27, 1
      %p239 = por %p237, %p238
      %p241 = scmp.ne.s32.totalorder %s226, %s240
      %p242 = scmp.eq.s32.totalorder %s27, 0
      %p243 = por %p241, %p242
      %p244 = scmp.le.s32.totalorder 1, %s21
      %p245 = scmp.lt.s32.totalorder %s21, 3
      %p246 = pnand %p244, %p245
      %p247 = pneg %p246
      // Predicated region
      $region9: #{tpu_custom_call.1} parent=5 // pred_check
        _
      $region10: #{tpu_custom_call.1} parent=5 // pred_check_branch
        %249 = sbr.rel (%p246) target = $region12
      $region11: #{tpu_custom_call.1} parent=5 // pred_region
        %s250 = ssub.s32 %s21, 1
        // Predicated region
        $region13: #{tpu_custom_call.1} parent=11 // pred_check
          %p251 = pneg %p68
        $region14: #{tpu_custom_call.1} parent=11 // pred_check_branch
          %253 = sbr.rel (%p251) target = $region16
        $region15: #{tpu_custom_call.1} parent=11 // pred_region
          %255 = vsyncadd [#allocation12], 0
          %s256 = sshll.u32 %s1, 4
          %s257 = int_to_ptr.hbm [resolvable:$true] %s256
          %s258 = sshll.u32 [#allocation11], 4
          %s259 = int_to_ptr.vmem [resolvable:$true] %s258
          %264 = dma.hbm_to_vmem [thread:$0]  %s257, 1024, %s259, [#allocation12], 128, 128, 8
        $region16: #{tpu_custom_call.1} parent=11 // pred_fallthru
          _
        // Predicated region
        $region17: #{tpu_custom_call.1} parent=11 // pred_check
          %p265 = pneg %p89
        $region18: #{tpu_custom_call.1} parent=11 // pred_check_branch
          %267 = sbr.rel (%p265) target = $region20
        $region19: #{tpu_custom_call.1} parent=11 // pred_region
          _
        $region20: #{tpu_custom_call.1} parent=11 // pred_fallthru
          _
        // Predicated region
        $region21: #{tpu_custom_call.1} parent=11 // pred_check
          %p268 = pneg %p110
        $region22: #{tpu_custom_call.1} parent=11 // pred_check_branch
          %270 = sbr.rel (%p268) target = $region24
        $region23: #{tpu_custom_call.1} parent=11 // pred_region
          %272 = vsyncadd [#allocation12], 0
          %s273 = sshll.u32 %s3, 4
          %s274 = int_to_ptr.hbm [resolvable:$true] %s273
          %s275 = sshll.u32 [#allocation13], 4
          %s276 = int_to_ptr.vmem [resolvable:$true] %s275
          %281 = dma.hbm_to_vmem [thread:$0]  %s274, 1024, %s276, [#allocation12], 128, 128, 8
        $region24: #{tpu_custom_call.1} parent=11 // pred_fallthru
          _
        // Predicated region
        $region25: #{tpu_custom_call.1} parent=11 // pred_check
          %p282 = pneg %p131
        $region26: #{tpu_custom_call.1} parent=11 // pred_check_branch
          %284 = sbr.rel (%p282) target = $region28
        $region27: #{tpu_custom_call.1} parent=11 // pred_region
          _
        $region28: #{tpu_custom_call.1} parent=11 // pred_fallthru
          _
        // Predicated region
        $region29: #{tpu_custom_call.1} parent=11 // pred_check
          %p285 = pneg %p152
        $region30: #{tpu_custom_call.1} parent=11 // pred_check_branch
          %287 = sbr.rel (%p285) target = $region32
        $region31: #{tpu_custom_call.1} parent=11 // pred_region
          %289 = vsyncadd [#allocation15], 0
          %s290 = sshll.u32 %s5, 4
          %s291 = int_to_ptr.hbm [resolvable:$true] %s290
          %s292 = sshll.u32 [#allocation14], 4
          %s293 = int_to_ptr.vmem [resolvable:$true] %s292
          %298 = dma.hbm_to_vmem [thread:$0]  %s291, 1024, %s293, [#allocation15], 128, 128, 8
        $region32: #{tpu_custom_call.1} parent=11 // pred_fallthru
          _
        // Predicated region
        $region33: #{tpu_custom_call.1} parent=11 // pred_check
          %p299 = pneg %p173
        $region34: #{tpu_custom_call.1} parent=11 // pred_check_branch
          %301 = sbr.rel (%p299) target = $region36
        $region35: #{tpu_custom_call.1} parent=11 // pred_region
          _
        $region36: #{tpu_custom_call.1} parent=11 // pred_fallthru
          _
        // Predicated region
        $region37: #{tpu_custom_call.1} parent=11 // pred_check
          %p302 = pneg %p194
        $region38: #{tpu_custom_call.1} parent=11 // pred_check_branch
          %304 = sbr.rel (%p302) target = $region40
        $region39: #{tpu_custom_call.1} parent=11 // pred_region
          %306 = vsyncadd [#allocation15], 0
          %s307 = sshll.u32 %s7, 4
          %s308 = int_to_ptr.hbm [resolvable:$true] %s307
          %s309 = sshll.u32 [#allocation16], 4
          %s310 = int_to_ptr.vmem [resolvable:$true] %s309
          %315 = dma.hbm_to_vmem [thread:$0]  %s308, 512, %s310, [#allocation15], 128, 128, 8
        $region40: #{tpu_custom_call.1} parent=11 // pred_fallthru
          _
        // Predicated region
        $region41: #{tpu_custom_call.1} parent=11 // pred_check
          %p316 = pneg %p215
        $region42: #{tpu_custom_call.1} parent=11 // pred_check_branch
          %318 = sbr.rel (%p316) target = $region44
        $region43: #{tpu_custom_call.1} parent=11 // pred_region
          _
        $region44: #{tpu_custom_call.1} parent=11 // pred_fallthru
          _
      $region12: #{tpu_custom_call.1} parent=5 // pred_fallthru
        _
      %p319 = scmp.lt.s32.totalorder %s21, 2
      // Predicated region
      $region45: #{tpu_custom_call.1} parent=5 // pred_check
        %p320 = pneg %p319
      $region46: #{tpu_custom_call.1} parent=5 // pred_check_branch
        %322 = sbr.rel (%p320) target = $region48
      $region47: #{tpu_custom_call.1} parent=5 // pred_region
        // Predicated region
        $region49: #{tpu_custom_call.1} parent=47 // pred_check
          %p323 = pneg %p41
        $region50: #{tpu_custom_call.1} parent=47 // pred_check_branch
          %325 = sbr.rel (%p323) target = $region52
        $region51: #{tpu_custom_call.1} parent=47 // pred_region
          %s326 = sand.u32 %s31, 1
          %s327 = scalar_lea.sflag [#allocation9], %s326
          %s328 = sand.u32 %s31, 1
          %s329 = smul.addr %s328, 32
          %s330 = scalar_lea.vmem [#allocation8], %s329
          %s331 = smul.u32 4, %s21
          %333 = vsyncadd %s327, 0
          %s334 = smul.addr %s331, 8
          %s335 = scalar_lea.hbm %s0, %s334
          %s336 = sshll.u32 %s335, 4
          %s337 = int_to_ptr.hbm [resolvable:$true] %s336
          %s338 = sshll.u32 %s330, 4
          %s339 = int_to_ptr.vmem [resolvable:$true] %s338
          %344 = dma.hbm_to_vmem [thread:$0]  %s337, 512, %s339, %s327, 128, 128, 8
        $region52: #{tpu_custom_call.1} parent=47 // pred_fallthru
          _
      $region48: #{tpu_custom_call.1} parent=5 // pred_fallthru
        _
      %p345 = scmp.le.s32.totalorder 1, %s21
      %p346 = scmp.lt.s32.totalorder %s21, 3
      %p347 = pnand %p345, %p346
      %p348 = pneg %p347
      // Predicated region
      $region53: #{tpu_custom_call.1} parent=5 // pred_check
        _
      $region54: #{tpu_custom_call.1} parent=5 // pred_check_branch
        %350 = sbr.rel (%p347) target = $region56
      $region55: #{tpu_custom_call.1} parent=5 // pred_region
        %s351 = ssub.s32 %s21, 1
        %s352 = sand.u32 %s34, 1
        %s353 = scalar_lea.sflag [#allocation9], %s352
        %s354 = sand.u32 %s34, 1
        %s355 = smul.addr %s354, 32
        %s356 = scalar_lea.vmem [#allocation8], %s355
        // Predicated region
        $region57: #{tpu_custom_call.1} parent=55 // pred_check
          %p357 = pneg %p47
        $region58: #{tpu_custom_call.1} parent=55 // pred_check_branch
          %359 = sbr.rel (%p357) target = $region60
        $region59: #{tpu_custom_call.1} parent=55 // pred_region
          %361 = dma.done %s353, 512
        $region60: #{tpu_custom_call.1} parent=55 // pred_fallthru
          _
        // Predicated region
        $region61: #{tpu_custom_call.1} parent=55 // pred_check
          %p362 = pneg %p68
        $region62: #{tpu_custom_call.1} parent=55 // pred_check_branch
          %364 = sbr.rel (%p362) target = $region64
        $region63: #{tpu_custom_call.1} parent=55 // pred_region
          %366 = dma.done [#allocation12], 1024
        $region64: #{tpu_custom_call.1} parent=55 // pred_fallthru
          _
        // Predicated region
        $region65: #{tpu_custom_call.1} parent=55 // pred_check
          %p367 = pneg %p110
        $region66: #{tpu_custom_call.1} parent=55 // pred_check_branch
          %369 = sbr.rel (%p367) target = $region68
        $region67: #{tpu_custom_call.1} parent=55 // pred_region
          %371 = dma.done [#allocation12], 1024
        $region68: #{tpu_custom_call.1} parent=55 // pred_fallthru
          _
        // Predicated region
        $region69: #{tpu_custom_call.1} parent=55 // pred_check
          %p372 = pneg %p152
        $region70: #{tpu_custom_call.1} parent=55 // pred_check_branch
          %374 = sbr.rel (%p372) target = $region72
        $region71: #{tpu_custom_call.1} parent=55 // pred_region
          %376 = dma.done [#allocation15], 1024
        $region72: #{tpu_custom_call.1} parent=55 // pred_fallthru
          _
        // Predicated region
        $region73: #{tpu_custom_call.1} parent=55 // pred_check
          %p377 = pneg %p194
        $region74: #{tpu_custom_call.1} parent=55 // pred_check_branch
          %379 = sbr.rel (%p377) target = $region76
        $region75: #{tpu_custom_call.1} parent=55 // pred_region
          %381 = dma.done [#allocation15], 512
        $region76: #{tpu_custom_call.1} parent=55 // pred_fallthru
          _
        %s382 = sand.u32 %s34, 1
        %s383 = scalar_lea.sflag [#allocation9], %s382
        %s384 = sand.u32 %s34, 1
        %s385 = smul.addr %s384, 32
        %s386 = scalar_lea.vmem [#allocation8], %s385
        %p387 = pneg %p47
        %p388 = pneg %p44
        %p389 = pneg %p68
        %p390 = pneg %p65
        %p391 = pneg %p89
        %p392 = pneg %p86
        %p393 = pneg %p110
        %p394 = pneg %p107
        %p395 = pneg %p131
        %p396 = pneg %p128
        %p397 = pneg %p152
        %p398 = pneg %p149
        %p399 = pneg %p173
        %p400 = pneg %p170
        %p401 = pneg %p194
        %p402 = pneg %p191
        %p403 = pneg %p215
        %p404 = pneg %p212
        %p405 = pneg %p236
        %p406 = pneg %p233
        %s407 = smul.u32 4, %s26
        %p408 = scmp.eq.s32.totalorder %s26, 0
        // Predicated region
        $region77: #{tpu_custom_call.1} parent=55 // pred_check
          %p409 = pneg %p408
        $region78: #{tpu_custom_call.1} parent=55 // pred_check_branch
          %411 = sbr.rel (%p409) target = $region80
        $region79: #{tpu_custom_call.1} parent=55 // pred_region
          %vm412 = vcmask 261120
          %413 = vst.msk [vmem:[#allocation2] sm:$0xff] %vm412, 0.0
          %414 = vst.msk [vmem:[#allocation3] sm:$0xff] %vm412, 0.0
          %415 = vst.msk [vmem:[#allocation4] sm:$0xff] %vm412, 0.0
          %416 = vst.msk [vmem:[#allocation5] sm:$0xff] %vm412, 0.0
          %417 = vst.msk [vmem:[#allocation6] sm:$0xff] %vm412, 0.0
          %418 = vst.msk [vmem:[#allocation7] sm:$0xff] %vm412, 0.0
        $region80: #{tpu_custom_call.1} parent=55 // pred_fallthru
          _
        %v419 = vld [vmem:[%s2] sm:$0x1]
        %v421 = vperm.slane %v419, 0
        %v423 = vld [vmem:[%s4] sm:$0x1]
        %v425 = vperm.slane %v423, 0
        %v427 = vld [vmem:[%s6] sm:$0x1]
        %v429 = vperm.slane %v427, 0
        %v431 = vld [vmem:[#allocation2] sm:$0xff]
        %v432 = vld [vmem:[#allocation3] sm:$0xff]
        %v433 = vld [vmem:[#allocation4] sm:$0xff]
        %v434 = vld [vmem:[#allocation5] sm:$0xff]
        %v435 = vld [vmem:[#allocation6] sm:$0xff]
        %v436 = vld [vmem:[#allocation7] sm:$0xff]
        %v437 = vld [vmem:[%s356] sm:$0xff]
        %439 = vrot.lane.b32.xlu0 %v431, 32
        %v440 = vpop.permute.xlu0 %439
        %vm442 = vcmask 261120
        %v443 = vsel %vm442, %v437, %v440
        %v444 = vld [vmem:[#allocation11] sm:$0xff]
        %v445 = vld [vmem:[#allocation11 + $0x8] sm:$0xff]
        %v446 = vld [vmem:[#allocation11 + $0x10] sm:$0xff]
        %v447 = vld [vmem:[#allocation11 + $0x18] sm:$0xff]
        %v448 = vld [vmem:[#allocation11 + $0x20] sm:$0xff]
        %v449 = vld [vmem:[#allocation11 + $0x28] sm:$0xff]
        %v450 = vld [vmem:[#allocation11 + $0x30] sm:$0xff]
        %v451 = vld [vmem:[#allocation11 + $0x38] sm:$0xff]
        %vm452 = vcmask 523264
        %v454 = vsel %vm452, %v443, 0
        %456 = vmatpush.msra.mxu0 0.0
        %457 = vmatpush.msra.mxu0 0.0
        %458 = vmatpush.msra.mxu0 0.0
        %459 = vmatpush.msra.mxu0 0.0
        %460 = vmatpush.msra.mxu0 0.0
        %461 = vmatpush.msra.mxu0 0.0
        %462 = vmatpush.msra.mxu0 0.0
        %463 = vmatpush.msra.mxu0 0.0
        %464 = vmatpush.msra.mxu0 %v451
        %465 = vmatpush.msra.mxu0 %v450
        %466 = vmatpush.msra.mxu0 %v449
        %467 = vmatpush.msra.mxu0 %v448
        %468 = vmatpush.msra.mxu0 %v447
        %469 = vmatpush.msra.mxu0 %v446
        %470 = vmatpush.msra.mxu0 %v445
        %471 = vmatpush.msra.mxu0 %v444
        %472 = vmatmul.f32.gmra.mxu0 %v454
        %v473 = vpop.f32.mrf.mxu0
        %v474 = vadd.f32 %v421, %v473
        %475 = vdwg.mxu0
        %v476 = vxor.u32 %v474, 2147483648
        %v477 = vmul.f32 %v476, 1.442695
        %v478 = vpow.pop %v477
        %v479 = vadd.f32 %v478, 1.0
        %v480 = vrcp.pop %v479
        %v481 = vmul.f32 %v479, %v480
        %v482 = vsub.f32 1.0, %v481
        %v483 = vmul.f32 %v480, %v482
        %v484 = vadd.f32 %v480, %v483
        %vm485 = vweird.f32 %v479
        %vm486 = vweird.f32 %v480
        %vm487 = vmor %vm485, %vm486
        %v488 = vsel %vm487, %v480, %v484
        %v489 = vand.u32 2147483647, %v479
        %vm490 = vcmp.eq.f32.partialorder %v489, 8.507059e+37
        %v491 = vand.u32 %v479, 2147483648
        %v492 = vor.u32 1.1754944e-38, %v491
        %v493 = vsel %vm490, %v492, %v488
        %v494 = vmul.f32 1.0, %v493
        %v495 = vtanh.pop %v474
        %497 = vrot.lane.b32.xlu0 %v432, 32
        %v498 = vpop.permute.xlu0 %497
        %v500 = vmul.f32 %v494, %v498
        %502 = vrot.lane.b32.xlu0 %v495, 64
        %v503 = vpop.permute.xlu0 %502
        %v505 = vmul.f32 %v494, %v503
        %507 = vrot.lane.b32.xlu0 %v505, 32
        %v508 = vpop.permute.xlu0 %507
        %v510 = vadd.f32 %v500, %v508
        %v511 = vtanh.pop %v510
        %513 = vrot.lane.b32.xlu0 %v511, 64
        %v514 = vpop.permute.xlu0 %513
        %v516 = vmul.f32 %v494, %v514
        %518 = vrot.lane.b32.xlu0 %v516, 32
        %v519 = vpop.permute.xlu0 %518
        %522 = vrot.lane.b32.xlu0 %v433, 32
        %v523 = vpop.permute.xlu0 %522
        %v525 = vsel %vm442, %v519, %v523
        %v526 = vld [vmem:[#allocation13] sm:$0xff]
        %v527 = vld [vmem:[#allocation13 + $0x8] sm:$0xff]
        %v528 = vld [vmem:[#allocation13 + $0x10] sm:$0xff]
        %v529 = vld [vmem:[#allocation13 + $0x18] sm:$0xff]
        %v530 = vld [vmem:[#allocation13 + $0x20] sm:$0xff]
        %v531 = vld [vmem:[#allocation13 + $0x28] sm:$0xff]
        %v532 = vld [vmem:[#allocation13 + $0x30] sm:$0xff]
        %v533 = vld [vmem:[#allocation13 + $0x38] sm:$0xff]
        %v535 = vsel %vm452, %v525, 0
        %537 = vmatpush.msra.mxu0 0.0
        %538 = vmatpush.msra.mxu0 0.0
        %539 = vmatpush.msra.mxu0 0.0
        %540 = vmatpush.msra.mxu0 0.0
        %541 = vmatpush.msra.mxu0 0.0
        %542 = vmatpush.msra.mxu0 0.0
        %543 = vmatpush.msra.mxu0 0.0
        %544 = vmatpush.msra.mxu0 0.0
        %545 = vmatpush.msra.mxu0 %v533
        %546 = vmatpush.msra.mxu0 %v532
        %547 = vmatpush.msra.mxu0 %v531
        %548 = vmatpush.msra.mxu0 %v530
        %549 = vmatpush.msra.mxu0 %v529
        %550 = vmatpush.msra.mxu0 %v528
        %551 = vmatpush.msra.mxu0 %v527
        %552 = vmatpush.msra.mxu0 %v526
        %553 = vmatmul.f32.gmra.mxu0 %v535
        %v554 = vpop.f32.mrf.mxu0
        %v555 = vadd.f32 %v425, %v554
        %556 = vdwg.mxu0
        %v557 = vxor.u32 %v555, 2147483648
        %v558 = vmul.f32 %v557, 1.442695
        %v559 = vpow.pop %v558
        %v560 = vadd.f32 %v559, 1.0
        %v561 = vrcp.pop %v560
        %v562 = vmul.f32 %v560, %v561
        %v563 = vsub.f32 1.0, %v562
        %v564 = vmul.f32 %v561, %v563
        %v565 = vadd.f32 %v561, %v564
        %vm566 = vweird.f32 %v560
        %vm567 = vweird.f32 %v561
        %vm568 = vmor %vm566, %vm567
        %v569 = vsel %vm568, %v561, %v565
        %v570 = vand.u32 2147483647, %v560
        %vm571 = vcmp.eq.f32.partialorder %v570, 8.507059e+37
        %v572 = vand.u32 %v560, 2147483648
        %v573 = vor.u32 1.1754944e-38, %v572
        %v574 = vsel %vm571, %v573, %v569
        %v575 = vmul.f32 1.0, %v574
        %v576 = vtanh.pop %v555
        %578 = vrot.lane.b32.xlu0 %v434, 32
        %v579 = vpop.permute.xlu0 %578
        %v581 = vmul.f32 %v575, %v579
        %583 = vrot.lane.b32.xlu0 %v576, 64
        %v584 = vpop.permute.xlu0 %583
        %v586 = vmul.f32 %v575, %v584
        %588 = vrot.lane.b32.xlu0 %v586, 32
        %v589 = vpop.permute.xlu0 %588
        %v591 = vadd.f32 %v581, %v589
        %v592 = vtanh.pop %v591
        %594 = vrot.lane.b32.xlu0 %v592, 64
        %v595 = vpop.permute.xlu0 %594
        %v597 = vmul.f32 %v575, %v595
        %599 = vrot.lane.b32.xlu0 %v597, 32
        %v600 = vpop.permute.xlu0 %599
        %603 = vrot.lane.b32.xlu0 %v435, 32
        %v604 = vpop.permute.xlu0 %603
        %v606 = vsel %vm442, %v600, %v604
        %v607 = vld [vmem:[#allocation14] sm:$0xff]
        %v608 = vld [vmem:[#allocation14 + $0x8] sm:$0xff]
        %v609 = vld [vmem:[#allocation14 + $0x10] sm:$0xff]
        %v610 = vld [vmem:[#allocation14 + $0x18] sm:$0xff]
        %v611 = vld [vmem:[#allocation14 + $0x20] sm:$0xff]
        %v612 = vld [vmem:[#allocation14 + $0x28] sm:$0xff]
        %v613 = vld [vmem:[#allocation14 + $0x30] sm:$0xff]
        %v614 = vld [vmem:[#allocation14 + $0x38] sm:$0xff]
        %v616 = vsel %vm452, %v606, 0
        %618 = vmatpush.msra.mxu0 0.0
        %619 = vmatpush.msra.mxu0 0.0
        %620 = vmatpush.msra.mxu0 0.0
        %621 = vmatpush.msra.mxu0 0.0
        %622 = vmatpush.msra.mxu0 0.0
        %623 = vmatpush.msra.mxu0 0.0
        %624 = vmatpush.msra.mxu0 0.0
        %625 = vmatpush.msra.mxu0 0.0
        %626 = vmatpush.msra.mxu0 %v614
        %627 = vmatpush.msra.mxu0 %v613
        %628 = vmatpush.msra.mxu0 %v612
        %629 = vmatpush.msra.mxu0 %v611
        %630 = vmatpush.msra.mxu0 %v610
        %631 = vmatpush.msra.mxu0 %v609
        %632 = vmatpush.msra.mxu0 %v608
        %633 = vmatpush.msra.mxu0 %v607
        %634 = vmatmul.f32.gmra.mxu0 %v616
        %v635 = vpop.f32.mrf.mxu0
        %v636 = vadd.f32 %v429, %v635
        %637 = vdwg.mxu0
        %v638 = vxor.u32 %v636, 2147483648
        %v639 = vmul.f32 %v638, 1.442695
        %v640 = vpow.pop %v639
        %v641 = vadd.f32 %v640, 1.0
        %v642 = vrcp.pop %v641
        %v643 = vmul.f32 %v641, %v642
        %v644 = vsub.f32 1.0, %v643
        %v645 = vmul.f32 %v642, %v644
        %v646 = vadd.f32 %v642, %v645
        %vm647 = vweird.f32 %v641
        %vm648 = vweird.f32 %v642
        %vm649 = vmor %vm647, %vm648
        %v650 = vsel %vm649, %v642, %v646
        %v651 = vand.u32 2147483647, %v641
        %vm652 = vcmp.eq.f32.partialorder %v651, 8.507059e+37
        %v653 = vand.u32 %v641, 2147483648
        %v654 = vor.u32 1.1754944e-38, %v653
        %v655 = vsel %vm652, %v654, %v650
        %v656 = vmul.f32 1.0, %v655
        %v657 = vtanh.pop %v636
        %659 = vrot.lane.b32.xlu0 %v436, 32
        %v660 = vpop.permute.xlu0 %659
        %v662 = vmul.f32 %v656, %v660
        %664 = vrot.lane.b32.xlu0 %v657, 64
        %v665 = vpop.permute.xlu0 %664
        %v667 = vmul.f32 %v656, %v665
        %669 = vrot.lane.b32.xlu0 %v667, 32
        %v670 = vpop.permute.xlu0 %669
        %v672 = vadd.f32 %v662, %v670
        %v673 = vtanh.pop %v672
        %675 = vrot.lane.b32.xlu0 %v673, 64
        %v676 = vpop.permute.xlu0 %675
        %v678 = vmul.f32 %v656, %v676
        %s679 = scalar_lea.vmem %s356, 8 [#allocation8]
        %v680 = vld [vmem:[%s679] sm:$0xff]
        %681 = vrot.lane.b32.xlu0 %v516, 64
        %v682 = vpop.permute.xlu0 %681
        %v684 = vsel %vm442, %v680, %v682
        %v686 = vsel %vm452, %v684, 0
        %688 = vmatpush.msra.mxu0 0.0
        %689 = vmatpush.msra.mxu0 0.0
        %690 = vmatpush.msra.mxu0 0.0
        %691 = vmatpush.msra.mxu0 0.0
        %692 = vmatpush.msra.mxu0 0.0
        %693 = vmatpush.msra.mxu0 0.0
        %694 = vmatpush.msra.mxu0 0.0
        %695 = vmatpush.msra.mxu0 0.0
        %696 = vmatpush.msra.mxu0 %v451
        %697 = vmatpush.msra.mxu0 %v450
        %698 = vmatpush.msra.mxu0 %v449
        %699 = vmatpush.msra.mxu0 %v448
        %700 = vmatpush.msra.mxu0 %v447
        %701 = vmatpush.msra.mxu0 %v446
        %702 = vmatpush.msra.mxu0 %v445
        %703 = vmatpush.msra.mxu0 %v444
        %704 = vmatmul.f32.gmra.mxu0 %v686
        %v705 = vpop.f32.mrf.mxu0
        %v706 = vadd.f32 %v421, %v705
        %707 = vdwg.mxu0
        %v708 = vxor.u32 %v706, 2147483648
        %v709 = vmul.f32 %v708, 1.442695
        %v710 = vpow.pop %v709
        %v711 = vadd.f32 %v710, 1.0
        %v712 = vrcp.pop %v711
        %v713 = vmul.f32 %v711, %v712
        %v714 = vsub.f32 1.0, %v713
        %v715 = vmul.f32 %v712, %v714
        %v716 = vadd.f32 %v712, %v715
        %vm717 = vweird.f32 %v711
        %vm718 = vweird.f32 %v712
        %vm719 = vmor %vm717, %vm718
        %v720 = vsel %vm719, %v712, %v716
        %v721 = vand.u32 2147483647, %v711
        %vm722 = vcmp.eq.f32.partialorder %v721, 8.507059e+37
        %v723 = vand.u32 %v711, 2147483648
        %v724 = vor.u32 1.1754944e-38, %v723
        %v725 = vsel %vm722, %v724, %v720
        %v726 = vmul.f32 1.0, %v725
        %v727 = vtanh.pop %v706
        %v728 = vmul.f32 %v726, %v510
        %730 = vrot.lane.b32.xlu0 %v727, 64
        %v731 = vpop.permute.xlu0 %730
        %v733 = vmul.f32 %v726, %v731
        %735 = vrot.lane.b32.xlu0 %v733, 32
        %v736 = vpop.permute.xlu0 %735
        %v738 = vadd.f32 %v728, %v736
        %v739 = vtanh.pop %v738
        %741 = vrot.lane.b32.xlu0 %v739, 64
        %v742 = vpop.permute.xlu0 %741
        %v744 = vmul.f32 %v726, %v742
        %746 = vrot.lane.b32.xlu0 %v744, 32
        %v747 = vpop.permute.xlu0 %746
        %749 = vrot.lane.b32.xlu0 %v597, 64
        %v750 = vpop.permute.xlu0 %749
        %v752 = vsel %vm442, %v747, %v750
        %v754 = vsel %vm452, %v752, 0
        %756 = vmatpush.msra.mxu0 0.0
        %757 = vmatpush.msra.mxu0 0.0
        %758 = vmatpush.msra.mxu0 0.0
        %759 = vmatpush.msra.mxu0 0.0
        %760 = vmatpush.msra.mxu0 0.0
        %761 = vmatpush.msra.mxu0 0.0
        %762 = vmatpush.msra.mxu0 0.0
        %763 = vmatpush.msra.mxu0 0.0
        %764 = vmatpush.msra.mxu0 %v533
        %765 = vmatpush.msra.mxu0 %v532
        %766 = vmatpush.msra.mxu0 %v531
        %767 = vmatpush.msra.mxu0 %v530
        %768 = vmatpush.msra.mxu0 %v529
        %769 = vmatpush.msra.mxu0 %v528
        %770 = vmatpush.msra.mxu0 %v527
        %771 = vmatpush.msra.mxu0 %v526
        %772 = vmatmul.f32.gmra.mxu0 %v754
        %v773 = vpop.f32.mrf.mxu0
        %v774 = vadd.f32 %v425, %v773
        %775 = vdwg.mxu0
        %v776 = vxor.u32 %v774, 2147483648
        %v777 = vmul.f32 %v776, 1.442695
        %v778 = vpow.pop %v777
        %v779 = vadd.f32 %v778, 1.0
        %v780 = vrcp.pop %v779
        %v781 = vmul.f32 %v779, %v780
        %v782 = vsub.f32 1.0, %v781
        %v783 = vmul.f32 %v780, %v782
        %v784 = vadd.f32 %v780, %v783
        %vm785 = vweird.f32 %v779
        %vm786 = vweird.f32 %v780
        %vm787 = vmor %vm785, %vm786
        %v788 = vsel %vm787, %v780, %v784
        %v789 = vand.u32 2147483647, %v779
        %vm790 = vcmp.eq.f32.partialorder %v789, 8.507059e+37
        %v791 = vand.u32 %v779, 2147483648
        %v792 = vor.u32 1.1754944e-38, %v791
        %v793 = vsel %vm790, %v792, %v788
        %v794 = vmul.f32 1.0, %v793
        %v795 = vtanh.pop %v774
        %v796 = vmul.f32 %v794, %v591
        %798 = vrot.lane.b32.xlu0 %v795, 64
        %v799 = vpop.permute.xlu0 %798
        %v801 = vmul.f32 %v794, %v799
        %803 = vrot.lane.b32.xlu0 %v801, 32
        %v804 = vpop.permute.xlu0 %803
        %v806 = vadd.f32 %v796, %v804
        %v807 = vtanh.pop %v806
        %809 = vrot.lane.b32.xlu0 %v807, 64
        %v810 = vpop.permute.xlu0 %809
        %v812 = vmul.f32 %v794, %v810
        %814 = vrot.lane.b32.xlu0 %v812, 32
        %v815 = vpop.permute.xlu0 %814
        %818 = vrot.lane.b32.xlu0 %v678, 64
        %v819 = vpop.permute.xlu0 %818
        %v821 = vsel %vm442, %v815, %v819
        %v823 = vsel %vm452, %v821, 0
        %825 = vmatpush.msra.mxu0 0.0
        %826 = vmatpush.msra.mxu0 0.0
        %827 = vmatpush.msra.mxu0 0.0
        %828 = vmatpush.msra.mxu0 0.0
        %829 = vmatpush.msra.mxu0 0.0
        %830 = vmatpush.msra.mxu0 0.0
        %831 = vmatpush.msra.mxu0 0.0
        %832 = vmatpush.msra.mxu0 0.0
        %833 = vmatpush.msra.mxu0 %v614
        %834 = vmatpush.msra.mxu0 %v613
        %835 = vmatpush.msra.mxu0 %v612
        %836 = vmatpush.msra.mxu0 %v611
        %837 = vmatpush.msra.mxu0 %v610
        %838 = vmatpush.msra.mxu0 %v609
        %839 = vmatpush.msra.mxu0 %v608
        %840 = vmatpush.msra.mxu0 %v607
        %841 = vmatmul.f32.gmra.mxu0 %v823
        %v842 = vpop.f32.mrf.mxu0
        %v843 = vadd.f32 %v429, %v842
        %844 = vdwg.mxu0
        %v845 = vxor.u32 %v843, 2147483648
        %v846 = vmul.f32 %v845, 1.442695
        %v847 = vpow.pop %v846
        %v848 = vadd.f32 %v847, 1.0
        %v849 = vrcp.pop %v848
        %v850 = vmul.f32 %v848, %v849
        %v851 = vsub.f32 1.0, %v850
        %v852 = vmul.f32 %v849, %v851
        %v853 = vadd.f32 %v849, %v852
        %vm854 = vweird.f32 %v848
        %vm855 = vweird.f32 %v849
        %vm856 = vmor %vm854, %vm855
        %v857 = vsel %vm856, %v849, %v853
        %v858 = vand.u32 2147483647, %v848
        %vm859 = vcmp.eq.f32.partialorder %v858, 8.507059e+37
        %v860 = vand.u32 %v848, 2147483648
        %v861 = vor.u32 1.1754944e-38, %v860
        %v862 = vsel %vm859, %v861, %v857
        %v863 = vmul.f32 1.0, %v862
        %v864 = vtanh.pop %v843
        %v865 = vmul.f32 %v863, %v672
        %867 = vrot.lane.b32.xlu0 %v864, 64
        %v868 = vpop.permute.xlu0 %867
        %v870 = vmul.f32 %v863, %v868
        %872 = vrot.lane.b32.xlu0 %v870, 32
        %v873 = vpop.permute.xlu0 %872
        %v875 = vadd.f32 %v865, %v873
        %v876 = vtanh.pop %v875
        %878 = vrot.lane.b32.xlu0 %v876, 64
        %v879 = vpop.permute.xlu0 %878
        %v881 = vmul.f32 %v863, %v879
        %s882 = scalar_lea.vmem %s356, 16 [#allocation8]
        %v883 = vld [vmem:[%s882] sm:$0xff]
        %884 = vrot.lane.b32.xlu0 %v744, 64
        %v885 = vpop.permute.xlu0 %884
        %v887 = vsel %vm442, %v883, %v885
        %v889 = vsel %vm452, %v887, 0
        %891 = vmatpush.msra.mxu0 0.0
        %892 = vmatpush.msra.mxu0 0.0
        %893 = vmatpush.msra.mxu0 0.0
        %894 = vmatpush.msra.mxu0 0.0
        %895 = vmatpush.msra.mxu0 0.0
        %896 = vmatpush.msra.mxu0 0.0
        %897 = vmatpush.msra.mxu0 0.0
        %898 = vmatpush.msra.mxu0 0.0
        %899 = vmatpush.msra.mxu0 %v451
        %900 = vmatpush.msra.mxu0 %v450
        %901 = vmatpush.msra.mxu0 %v449
        %902 = vmatpush.msra.mxu0 %v448
        %903 = vmatpush.msra.mxu0 %v447
        %904 = vmatpush.msra.mxu0 %v446
        %905 = vmatpush.msra.mxu0 %v445
        %906 = vmatpush.msra.mxu0 %v444
        %907 = vmatmul.f32.gmra.mxu0 %v889
        %v908 = vpop.f32.mrf.mxu0
        %v909 = vadd.f32 %v421, %v908
        %910 = vdwg.mxu0
        %v911 = vxor.u32 %v909, 2147483648
        %v912 = vmul.f32 %v911, 1.442695
        %v913 = vpow.pop %v912
        %v914 = vadd.f32 %v913, 1.0
        %v915 = vrcp.pop %v914
        %v916 = vmul.f32 %v914, %v915
        %v917 = vsub.f32 1.0, %v916
        %v918 = vmul.f32 %v915, %v917
        %v919 = vadd.f32 %v915, %v918
        %vm920 = vweird.f32 %v914
        %vm921 = vweird.f32 %v915
        %vm922 = vmor %vm920, %vm921
        %v923 = vsel %vm922, %v915, %v919
        %v924 = vand.u32 2147483647, %v914
        %vm925 = vcmp.eq.f32.partialorder %v924, 8.507059e+37
        %v926 = vand.u32 %v914, 2147483648
        %v927 = vor.u32 1.1754944e-38, %v926
        %v928 = vsel %vm925, %v927, %v923
        %v929 = vmul.f32 1.0, %v928
        %v930 = vtanh.pop %v909
        %v931 = vmul.f32 %v929, %v738
        %933 = vrot.lane.b32.xlu0 %v930, 64
        %v934 = vpop.permute.xlu0 %933
        %v936 = vmul.f32 %v929, %v934
        %938 = vrot.lane.b32.xlu0 %v936, 32
        %v939 = vpop.permute.xlu0 %938
        %v941 = vadd.f32 %v931, %v939
        %v942 = vtanh.pop %v941
        %944 = vrot.lane.b32.xlu0 %v942, 64
        %v945 = vpop.permute.xlu0 %944
        %v947 = vmul.f32 %v929, %v945
        %949 = vrot.lane.b32.xlu0 %v947, 32
        %v950 = vpop.permute.xlu0 %949
        %952 = vrot.lane.b32.xlu0 %v812, 64
        %v953 = vpop.permute.xlu0 %952
        %v955 = vsel %vm442, %v950, %v953
        %v957 = vsel %vm452, %v955, 0
        %959 = vmatpush.msra.mxu0 0.0
        %960 = vmatpush.msra.mxu0 0.0
        %961 = vmatpush.msra.mxu0 0.0
        %962 = vmatpush.msra.mxu0 0.0
        %963 = vmatpush.msra.mxu0 0.0
        %964 = vmatpush.msra.mxu0 0.0
        %965 = vmatpush.msra.mxu0 0.0
        %966 = vmatpush.msra.mxu0 0.0
        %967 = vmatpush.msra.mxu0 %v533
        %968 = vmatpush.msra.mxu0 %v532
        %969 = vmatpush.msra.mxu0 %v531
        %970 = vmatpush.msra.mxu0 %v530
        %971 = vmatpush.msra.mxu0 %v529
        %972 = vmatpush.msra.mxu0 %v528
        %973 = vmatpush.msra.mxu0 %v527
        %974 = vmatpush.msra.mxu0 %v526
        %975 = vmatmul.f32.gmra.mxu0 %v957
        %v976 = vpop.f32.mrf.mxu0
        %v977 = vadd.f32 %v425, %v976
        %978 = vdwg.mxu0
        %v979 = vxor.u32 %v977, 2147483648
        %v980 = vmul.f32 %v979, 1.442695
        %v981 = vpow.pop %v980
        %v982 = vadd.f32 %v981, 1.0
        %v983 = vrcp.pop %v982
        %v984 = vmul.f32 %v982, %v983
        %v985 = vsub.f32 1.0, %v984
        %v986 = vmul.f32 %v983, %v985
        %v987 = vadd.f32 %v983, %v986
        %vm988 = vweird.f32 %v982
        %vm989 = vweird.f32 %v983
        %vm990 = vmor %vm988, %vm989
        %v991 = vsel %vm990, %v983, %v987
        %v992 = vand.u32 2147483647, %v982
        %vm993 = vcmp.eq.f32.partialorder %v992, 8.507059e+37
        %v994 = vand.u32 %v982, 2147483648
        %v995 = vor.u32 1.1754944e-38, %v994
        %v996 = vsel %vm993, %v995, %v991
        %v997 = vmul.f32 1.0, %v996
        %v998 = vtanh.pop %v977
        %v999 = vmul.f32 %v997, %v806
        %1001 = vrot.lane.b32.xlu0 %v998, 64
        %v1002 = vpop.permute.xlu0 %1001
        %v1004 = vmul.f32 %v997, %v1002
        %1006 = vrot.lane.b32.xlu0 %v1004, 32
        %v1007 = vpop.permute.xlu0 %1006
        %v1009 = vadd.f32 %v999, %v1007
        %v1010 = vtanh.pop %v1009
        %1012 = vrot.lane.b32.xlu0 %v1010, 64
        %v1013 = vpop.permute.xlu0 %1012
        %v1015 = vmul.f32 %v997, %v1013
        %1017 = vrot.lane.b32.xlu0 %v1015, 32
        %v1018 = vpop.permute.xlu0 %1017
        %1021 = vrot.lane.b32.xlu0 %v881, 64
        %v1022 = vpop.permute.xlu0 %1021
        %v1024 = vsel %vm442, %v1018, %v1022
        %v1026 = vsel %vm452, %v1024, 0
        %1028 = vmatpush.msra.mxu0 0.0
        %1029 = vmatpush.msra.mxu0 0.0
        %1030 = vmatpush.msra.mxu0 0.0
        %1031 = vmatpush.msra.mxu0 0.0
        %1032 = vmatpush.msra.mxu0 0.0
        %1033 = vmatpush.msra.mxu0 0.0
        %1034 = vmatpush.msra.mxu0 0.0
        %1035 = vmatpush.msra.mxu0 0.0
        %1036 = vmatpush.msra.mxu0 %v614
        %1037 = vmatpush.msra.mxu0 %v613
        %1038 = vmatpush.msra.mxu0 %v612
        %1039 = vmatpush.msra.mxu0 %v611
        %1040 = vmatpush.msra.mxu0 %v610
        %1041 = vmatpush.msra.mxu0 %v609
        %1042 = vmatpush.msra.mxu0 %v608
        %1043 = vmatpush.msra.mxu0 %v607
        %1044 = vmatmul.f32.gmra.mxu0 %v1026
        %v1045 = vpop.f32.mrf.mxu0
        %v1046 = vadd.f32 %v429, %v1045
        %1047 = vdwg.mxu0
        %v1048 = vxor.u32 %v1046, 2147483648
        %v1049 = vmul.f32 %v1048, 1.442695
        %v1050 = vpow.pop %v1049
        %v1051 = vadd.f32 %v1050, 1.0
        %v1052 = vrcp.pop %v1051
        %v1053 = vmul.f32 %v1051, %v1052
        %v1054 = vsub.f32 1.0, %v1053
        %v1055 = vmul.f32 %v1052, %v1054
        %v1056 = vadd.f32 %v1052, %v1055
        %vm1057 = vweird.f32 %v1051
        %vm1058 = vweird.f32 %v1052
        %vm1059 = vmor %vm1057, %vm1058
        %v1060 = vsel %vm1059, %v1052, %v1056
        %v1061 = vand.u32 2147483647, %v1051
        %vm1062 = vcmp.eq.f32.partialorder %v1061, 8.507059e+37
        %v1063 = vand.u32 %v1051, 2147483648
        %v1064 = vor.u32 1.1754944e-38, %v1063
        %v1065 = vsel %vm1062, %v1064, %v1060
        %v1066 = vmul.f32 1.0, %v1065
        %v1067 = vtanh.pop %v1046
        %v1068 = vmul.f32 %v1066, %v875
        %1070 = vrot.lane.b32.xlu0 %v1067, 64
        %v1071 = vpop.permute.xlu0 %1070
        %v1073 = vmul.f32 %v1066, %v1071
        %1075 = vrot.lane.b32.xlu0 %v1073, 32
        %v1076 = vpop.permute.xlu0 %1075
        %v1078 = vadd.f32 %v1068, %v1076
        %v1079 = vtanh.pop %v1078
        %1081 = vrot.lane.b32.xlu0 %v1079, 64
        %v1082 = vpop.permute.xlu0 %1081
        %v1084 = vmul.f32 %v1066, %v1082
        %s1085 = scalar_lea.vmem %s356, 24 [#allocation8]
        %v1086 = vld [vmem:[%s1085] sm:$0xff]
        %1087 = vrot.lane.b32.xlu0 %v947, 64
        %v1088 = vpop.permute.xlu0 %1087
        %v1090 = vsel %vm442, %v1086, %v1088
        %v1092 = vsel %vm452, %v1090, 0
        %1094 = vmatpush.msra.mxu0 0.0
        %1095 = vmatpush.msra.mxu0 0.0
        %1096 = vmatpush.msra.mxu0 0.0
        %1097 = vmatpush.msra.mxu0 0.0
        %1098 = vmatpush.msra.mxu0 0.0
        %1099 = vmatpush.msra.mxu0 0.0
        %1100 = vmatpush.msra.mxu0 0.0
        %1101 = vmatpush.msra.mxu0 0.0
        %1102 = vmatpush.msra.mxu0 %v451
        %1103 = vmatpush.msra.mxu0 %v450
        %1104 = vmatpush.msra.mxu0 %v449
        %1105 = vmatpush.msra.mxu0 %v448
        %1106 = vmatpush.msra.mxu0 %v447
        %1107 = vmatpush.msra.mxu0 %v446
        %1108 = vmatpush.msra.mxu0 %v445
        %1109 = vmatpush.msra.mxu0 %v444
        %1110 = vmatmul.f32.gmra.mxu0 %v1092
        %v1111 = vpop.f32.mrf.mxu0
        %v1112 = vadd.f32 %v421, %v1111
        %1113 = vdwg.mxu0
        %v1114 = vxor.u32 %v1112, 2147483648
        %v1115 = vmul.f32 %v1114, 1.442695
        %v1116 = vpow.pop %v1115
        %v1117 = vadd.f32 %v1116, 1.0
        %v1118 = vrcp.pop %v1117
        %v1119 = vmul.f32 %v1117, %v1118
        %v1120 = vsub.f32 1.0, %v1119
        %v1121 = vmul.f32 %v1118, %v1120
        %v1122 = vadd.f32 %v1118, %v1121
        %vm1123 = vweird.f32 %v1117
        %vm1124 = vweird.f32 %v1118
        %vm1125 = vmor %vm1123, %vm1124
        %v1126 = vsel %vm1125, %v1118, %v1122
        %v1127 = vand.u32 2147483647, %v1117
        %vm1128 = vcmp.eq.f32.partialorder %v1127, 8.507059e+37
        %v1129 = vand.u32 %v1117, 2147483648
        %v1130 = vor.u32 1.1754944e-38, %v1129
        %v1131 = vsel %vm1128, %v1130, %v1126
        %v1132 = vmul.f32 1.0, %v1131
        %v1133 = vtanh.pop %v1112
        %v1134 = vmul.f32 %v1132, %v941
        %1136 = vrot.lane.b32.xlu0 %v1133, 64
        %v1137 = vpop.permute.xlu0 %1136
        %v1139 = vmul.f32 %v1132, %v1137
        %1141 = vrot.lane.b32.xlu0 %v1139, 32
        %v1142 = vpop.permute.xlu0 %1141
        %v1144 = vadd.f32 %v1134, %v1142
        %v1145 = vtanh.pop %v1144
        %1147 = vrot.lane.b32.xlu0 %v1145, 64
        %v1148 = vpop.permute.xlu0 %1147
        %v1150 = vmul.f32 %v1132, %v1148
        %1152 = vrot.lane.b32.xlu0 %v1150, 32
        %v1153 = vpop.permute.xlu0 %1152
        %1155 = vrot.lane.b32.xlu0 %v1015, 64
        %v1156 = vpop.permute.xlu0 %1155
        %v1158 = vsel %vm442, %v1153, %v1156
        %v1160 = vsel %vm452, %v1158, 0
        %1162 = vmatpush.msra.mxu0 0.0
        %1163 = vmatpush.msra.mxu0 0.0
        %1164 = vmatpush.msra.mxu0 0.0
        %1165 = vmatpush.msra.mxu0 0.0
        %1166 = vmatpush.msra.mxu0 0.0
        %1167 = vmatpush.msra.mxu0 0.0
        %1168 = vmatpush.msra.mxu0 0.0
        %1169 = vmatpush.msra.mxu0 0.0
        %1170 = vmatpush.msra.mxu0 %v533
        %1171 = vmatpush.msra.mxu0 %v532
        %1172 = vmatpush.msra.mxu0 %v531
        %1173 = vmatpush.msra.mxu0 %v530
        %1174 = vmatpush.msra.mxu0 %v529
        %1175 = vmatpush.msra.mxu0 %v528
        %1176 = vmatpush.msra.mxu0 %v527
        %1177 = vmatpush.msra.mxu0 %v526
        %1178 = vmatmul.f32.gmra.mxu0 %v1160
        %v1179 = vpop.f32.mrf.mxu0
        %v1180 = vadd.f32 %v425, %v1179
        %1181 = vdwg.mxu0
        %v1182 = vxor.u32 %v1180, 2147483648
        %v1183 = vmul.f32 %v1182, 1.442695
        %v1184 = vpow.pop %v1183
        %v1185 = vadd.f32 %v1184, 1.0
        %v1186 = vrcp.pop %v1185
        %v1187 = vmul.f32 %v1185, %v1186
        %v1188 = vsub.f32 1.0, %v1187
        %v1189 = vmul.f32 %v1186, %v1188
        %v1190 = vadd.f32 %v1186, %v1189
        %vm1191 = vweird.f32 %v1185
        %vm1192 = vweird.f32 %v1186
        %vm1193 = vmor %vm1191, %vm1192
        %v1194 = vsel %vm1193, %v1186, %v1190
        %v1195 = vand.u32 2147483647, %v1185
        %vm1196 = vcmp.eq.f32.partialorder %v1195, 8.507059e+37
        %v1197 = vand.u32 %v1185, 2147483648
        %v1198 = vor.u32 1.1754944e-38, %v1197
        %v1199 = vsel %vm1196, %v1198, %v1194
        %v1200 = vmul.f32 1.0, %v1199
        %v1201 = vtanh.pop %v1180
        %v1202 = vmul.f32 %v1200, %v1009
        %1204 = vrot.lane.b32.xlu0 %v1201, 64
        %v1205 = vpop.permute.xlu0 %1204
        %v1207 = vmul.f32 %v1200, %v1205
        %1209 = vrot.lane.b32.xlu0 %v1207, 32
        %v1210 = vpop.permute.xlu0 %1209
        %v1212 = vadd.f32 %v1202, %v1210
        %v1213 = vtanh.pop %v1212
        %1215 = vrot.lane.b32.xlu0 %v1213, 64
        %v1216 = vpop.permute.xlu0 %1215
        %v1218 = vmul.f32 %v1200, %v1216
        %1220 = vrot.lane.b32.xlu0 %v1218, 32
        %v1221 = vpop.permute.xlu0 %1220
        %1224 = vrot.lane.b32.xlu0 %v1084, 64
        %v1225 = vpop.permute.xlu0 %1224
        %v1227 = vsel %vm442, %v1221, %v1225
        %v1229 = vsel %vm452, %v1227, 0
        %1231 = vmatpush.msra.mxu0 0.0
        %1232 = vmatpush.msra.mxu0 0.0
        %1233 = vmatpush.msra.mxu0 0.0
        %1234 = vmatpush.msra.mxu0 0.0
        %1235 = vmatpush.msra.mxu0 0.0
        %1236 = vmatpush.msra.mxu0 0.0
        %1237 = vmatpush.msra.mxu0 0.0
        %1238 = vmatpush.msra.mxu0 0.0
        %1239 = vmatpush.msra.mxu0 %v614
        %1240 = vmatpush.msra.mxu0 %v613
        %1241 = vmatpush.msra.mxu0 %v612
        %1242 = vmatpush.msra.mxu0 %v611
        %1243 = vmatpush.msra.mxu0 %v610
        %1244 = vmatpush.msra.mxu0 %v609
        %1245 = vmatpush.msra.mxu0 %v608
        %1246 = vmatpush.msra.mxu0 %v607
        %1247 = vmatmul.f32.gmra.mxu0 %v1229
        %v1248 = vpop.f32.mrf.mxu0
        %v1249 = vadd.f32 %v429, %v1248
        %1250 = vdwg.mxu0
        %v1251 = vxor.u32 %v1249, 2147483648
        %v1252 = vmul.f32 %v1251, 1.442695
        %v1253 = vpow.pop %v1252
        %v1254 = vadd.f32 %v1253, 1.0
        %v1255 = vrcp.pop %v1254
        %v1256 = vmul.f32 %v1254, %v1255
        %v1257 = vsub.f32 1.0, %v1256
        %v1258 = vmul.f32 %v1255, %v1257
        %v1259 = vadd.f32 %v1255, %v1258
        %vm1260 = vweird.f32 %v1254
        %vm1261 = vweird.f32 %v1255
        %vm1262 = vmor %vm1260, %vm1261
        %v1263 = vsel %vm1262, %v1255, %v1259
        %v1264 = vand.u32 2147483647, %v1254
        %vm1265 = vcmp.eq.f32.partialorder %v1264, 8.507059e+37
        %v1266 = vand.u32 %v1254, 2147483648
        %v1267 = vor.u32 1.1754944e-38, %v1266
        %v1268 = vsel %vm1265, %v1267, %v1263
        %v1269 = vmul.f32 1.0, %v1268
        %v1270 = vtanh.pop %v1249
        %v1271 = vmul.f32 %v1269, %v1078
        %1273 = vrot.lane.b32.xlu0 %v1270, 64
        %v1274 = vpop.permute.xlu0 %1273
        %v1276 = vmul.f32 %v1269, %v1274
        %1278 = vrot.lane.b32.xlu0 %v1276, 32
        %v1279 = vpop.permute.xlu0 %1278
        %v1281 = vadd.f32 %v1271, %v1279
        %v1282 = vtanh.pop %v1281
        %1284 = vrot.lane.b32.xlu0 %v1282, 64
        %v1285 = vpop.permute.xlu0 %1284
        %v1287 = vmul.f32 %v1269, %v1285
        %1288 = vst.msk [vmem:[#allocation2] sm:$0xff] %vm442, %v1153
        %1290 = vrot.lane.b32.xlu0 %v1144, 96
        %v1291 = vpop.permute.xlu0 %1290
        %1293 = vst.msk [vmem:[#allocation3] sm:$0xff] %vm442, %v1291
        %1294 = vst.msk [vmem:[#allocation4] sm:$0xff] %vm442, %v1221
        %1296 = vrot.lane.b32.xlu0 %v1212, 96
        %v1297 = vpop.permute.xlu0 %1296
        %1299 = vst.msk [vmem:[#allocation5] sm:$0xff] %vm442, %v1297
        %1301 = vrot.lane.b32.xlu0 %v1287, 32
        %v1302 = vpop.permute.xlu0 %1301
        %1304 = vst.msk [vmem:[#allocation6] sm:$0xff] %vm442, %v1302
        %1306 = vrot.lane.b32.xlu0 %v1281, 96
        %v1307 = vpop.permute.xlu0 %1306
        %1309 = vst.msk [vmem:[#allocation7] sm:$0xff] %vm442, %v1307
        %p1310 = scmp.eq.s32.totalorder %s26, 1
        // Predicated region
        $region81: #{tpu_custom_call.1} parent=55 // pred_check
          %p1311 = pneg %p1310
        $region82: #{tpu_custom_call.1} parent=55 // pred_check_branch
          %1313 = sbr.rel (%p1311) target = $region84
        $region83: #{tpu_custom_call.1} parent=55 // pred_region
          %v1314 = vld [vmem:[#allocation16] sm:$0xff]
          %v1315 = vld [vmem:[#allocation16 + $0x8] sm:$0xff]
          %v1316 = vld [vmem:[#allocation16 + $0x10] sm:$0xff]
          %v1317 = vld [vmem:[#allocation16 + $0x18] sm:$0xff]
          %v1318 = vld [vmem:[%s8] sm:$0x1]
          %v1320 = vperm.slane %v1318, 0
          %v1322 = vsel %vm442, %v1302, 0
          %1324 = vmatpush.msra.mxu0 0.0
          %1325 = vmatpush.msra.mxu0 0.0
          %1326 = vmatpush.msra.mxu0 0.0
          %1327 = vmatpush.msra.mxu0 0.0
          %1328 = vmatpush.msra.mxu0 0.0
          %1329 = vmatpush.msra.mxu0 0.0
          %1330 = vmatpush.msra.mxu0 0.0
          %1331 = vmatpush.msra.mxu0 0.0
          %1332 = vmatpush.msra.mxu0 0.0
          %1333 = vmatpush.msra.mxu0 0.0
          %1334 = vmatpush.msra.mxu0 0.0
          %1335 = vmatpush.msra.mxu0 0.0
          %1336 = vmatpush.msra.mxu0 %v1317
          %1337 = vmatpush.msra.mxu0 %v1316
          %1338 = vmatpush.msra.mxu0 %v1315
          %1339 = vmatpush.msra.mxu0 %v1314
          %1340 = vmatmul.f32.gmra.mxu0 %v1322
          %v1341 = vpop.f32.mrf.mxu0
          %v1342 = vadd.f32 %v1320, %v1341
          %1343 = vdwg.mxu0
          %v1344 = vmax.f32 %v1342, 0.0
          %v1345 = vmul.f32 %v1344, %v1344
          %v1346 = vsel %vm442, %v1345, 0.0
          %1347 = vadd.xlane.f32.xlu0 %v1346
          %v1348 = vpop.xlane.xlu0 %1347
          %v1349 = vmax.f32 %v1348, 1e-24
          %v1350 = vrsqrt.pop %v1349
          %v1351 = vmul.f32 %v1350, %v1349
          %v1352 = vmul.f32 %v1351, %v1350
          %v1353 = vmul.f32 0.5, %v1352
          %v1354 = vsub.f32 1.5, %v1353
          %v1355 = vmul.f32 %v1350, %v1354
          %vm1356 = vweird.f32 %v1349
          %vm1357 = vweird.f32 %v1350
          %vm1358 = vmor %vm1356, %vm1357
          %v1359 = vsel %vm1358, %v1350, %v1355
          %v1360 = vmul.f32 %v1344, %v1359
          %1361 = vst.msk [vmem:[#allocation17] sm:$0xff] %vm442, %v1360
        $region84: #{tpu_custom_call.1} parent=55 // pred_fallthru
          _
        // Predicated region
        $region85: #{tpu_custom_call.1} parent=55 // pred_check
          %p1362 = pneg %p233
        $region86: #{tpu_custom_call.1} parent=55 // pred_check_branch
          %1364 = sbr.rel (%p1362) target = $region88
        $region87: #{tpu_custom_call.1} parent=55 // pred_region
          %1366 = vsyncadd [#allocation10], 0
          %s1368 = sshll.u32 [#allocation17], 4
          %s1369 = int_to_ptr.vmem [resolvable:$true] %s1368
          %s1370 = sshll.u32 %s9, 4
          %s1371 = int_to_ptr.hbm [resolvable:$true] %s1370
          %1373 = dma.vmem_to_hbm [thread:$0]  %s1369, 128, %s1371, [#allocation10]
        $region88: #{tpu_custom_call.1} parent=55 // pred_fallthru
          _
        // Predicated region
        $region89: #{tpu_custom_call.1} parent=55 // pred_check
          %p1374 = pneg %p233
        $region90: #{tpu_custom_call.1} parent=55 // pred_check_branch
          %1376 = sbr.rel (%p1374) target = $region92
        $region91: #{tpu_custom_call.1} parent=55 // pred_region
          %1378 = dma.done [#allocation10], 128
        $region92: #{tpu_custom_call.1} parent=55 // pred_fallthru
          _
      $region56: #{tpu_custom_call.1} parent=5 // pred_fallthru
        _
      %p1379 = scmp.le.s32.totalorder 2, %s21
      // Predicated region
      $region93: #{tpu_custom_call.1} parent=5 // pred_check
        %p1380 = pneg %p1379
      $region94: #{tpu_custom_call.1} parent=5 // pred_check_branch
        %1382 = sbr.rel (%p1380) target = $region96
      $region95: #{tpu_custom_call.1} parent=5 // pred_region
        %s1383 = ssub.s32 %s21, 2
      $region96: #{tpu_custom_call.1} parent=5 // pred_fallthru
        _
    $region6: #{tpu_custom_call.1} parent=1 // loop_footer
      %s25 = sadd.s32 1, %s21
    $region7: #{tpu_custom_call.1} parent=1 // loop_footer_branch
      %20 = sbr.rel target = $region3
    $region8: #{tpu_custom_call.1} parent=1 // loop_exit
      _
    %1384 = vsyncpa [#allocation9], 1
    %s1385 = scalar_lea.sflag [#allocation9], 1
    %1386 = vsyncpa %s1385, 1
    %1387 = vsyncpa [#allocation12], 1
    %1388 = vsyncpa [#allocation15], 1
    %1389 = vsyncpa [#allocation10], 1
    %s1390 = scalar_lea.sflag [#allocation10], 1
    %1391 = vsyncpa %s1390, 1

</llo_original>
